<compile_context>
chip_gen: v6e
topology: v6e:2x2x1
jax: 0.10.0
libtpu: 0.0.40
codegen_flags: <defaults>
</compile_context>

<pallas_src>
import functools
import math

import jax
import jax.numpy as jnp
from jax.experimental import pallas as pl
from jax.experimental.pallas import tpu as pltpu


def _round_up(v, m):
    return ((v + m - 1) // m) * m


def _fused_gcn_kernel(x_ref, w1_ref, b1_ref, w2_ref, b2_ref, adj_ref,
                      out_ref, s1_ref, s2_ref, acc_ref, *, tm, tk):
    l = pl.program_id(0)          # layer (0: gc1, 1: gc2) -- sequential
    i = pl.program_id(1)          # output row tile
    k = pl.program_id(2)          # adjacency-column reduction tile
    nk = pl.num_programs(2)

    # S1 = X @ W1 : computed once at the very first grid step, kept
    # VMEM-resident (bf16) for the whole layer-0 adjacency pass.
    @pl.when((l == 0) & (i == 0) & (k == 0))
    def _():
        s1_ref[...] = jnp.dot(
            x_ref[...], w1_ref[...], preferred_element_type=jnp.float32
        ).astype(s1_ref.dtype)

    # Zero the f32 accumulator at the start of each (layer, row-tile) sweep.
    @pl.when(k == 0)
    def _():
        acc_ref[...] = jnp.zeros_like(acc_ref)

    koff = pl.multiple_of(k * tk, tk)

    # acc += adj[i-tile, k-tile] @ S[k-tile rows]   (bf16 MXU, f32 accumulate)
    @pl.when(l == 0)
    def _():
        acc_ref[...] += jnp.dot(
            adj_ref[...], s1_ref[pl.ds(koff, tk), :],
            preferred_element_type=jnp.float32)

    @pl.when(l == 1)
    def _():
        acc_ref[...] += jnp.dot(
            adj_ref[...], s2_ref[pl.ds(koff, tk), :],
            preferred_element_type=jnp.float32)

    # Layer-0 finalize for this row tile: h1 = relu(acc + b1)  (f32 epilogue),
    # then stage S2 rows = h1 @ W2 in VMEM for the layer-1 adjacency pass.
    @pl.when((l == 0) & (k == nk - 1))
    def _():
        h1 = jnp.maximum(acc_ref[...] + b1_ref[...], 0.0)
        ioff = pl.multiple_of(i * tm, tm)
        s2_ref[pl.ds(ioff, tm), :] = jnp.dot(
            h1.astype(w2_ref.dtype), w2_ref[...],
            preferred_element_type=jnp.float32).astype(s2_ref.dtype)
        # Deterministic contents for the (revisited) output block; it is fully
        # overwritten by the layer-1 finalize below before the final flush.
        out_ref[...] = jnp.zeros_like(out_ref)

    # Layer-1 finalize: out = acc + b2.
    @pl.when((l == 1) & (k == nk - 1))
    def _():
        out_ref[...] = (acc_ref[...] + b2_ref[...]).astype(out_ref.dtype)


def fused_gcn(x, adj, w1, b1, w2, b2):
    """Fused forward of GCN (inference): adj@(relu(adj@(x@w1)+b1)@w2)+b2."""
    n, nfeat = x.shape
    nhid = w1.shape[1]
    nclass = w2.shape[1]

    # Lane-dense padding: common 128-multiple width for hidden & class dims.
    p = _round_up(max(nhid, nclass, 1), 128)
    f_pad = _round_up(nfeat, 128)
    n_pad = _round_up(n, 128)

    # Adjacency tile sizes (divisors of n_pad). 256x512 bf16 tiles,
    # double-buffered, stay well under v7x's 64 MiB VMEM; v6e/v5e (128 MiB)
    # could go larger but this choice is safe on every generation.
    tk = 512 if n_pad % 512 == 0 else (256 if n_pad % 256 == 0 else 128)
    tm = 256 if n_pad % 256 == 0 else 128
    r_tiles = n_pad // tm
    k_tiles = n_pad // tk

    # bf16 MXU operands (zero-padded), f32 biases.
    x_p = jnp.zeros((n_pad, f_pad), jnp.bfloat16).at[:n, :nfeat].set(
        x.astype(jnp.bfloat16))
    adj_p = jnp.zeros((n_pad, n_pad), jnp.bfloat16).at[:n, :n].set(
        adj.astype(jnp.bfloat16))
    w1_p = jnp.zeros((f_pad, p), jnp.bfloat16).at[:nfeat, :nhid].set(
        w1.astype(jnp.bfloat16))
    w2_p = jnp.zeros((p, p), jnp.bfloat16).at[:nhid, :nclass].set(
        w2.astype(jnp.bfloat16))
    b1_p = jnp.zeros((1, p), jnp.float32).at[0, :nhid].set(b1)
    b2_p = jnp.zeros((1, p), jnp.float32).at[0, :nclass].set(b2)

    kernel = functools.partial(_fused_gcn_kernel, tm=tm, tk=tk)

    flops = (2 * n_pad * f_pad * p          # S1 = X @ W1
             + 2 * n_pad * n_pad * p        # layer-0 adjacency pass
             + 2 * n_pad * p * p            # S2 = H1 @ W2
             + 2 * n_pad * n_pad * p)       # layer-1 adjacency pass
    bytes_accessed = (x_p.size * 2 + w1_p.size * 2 + w2_p.size * 2
                      + (b1_p.size + b2_p.size) * 4
                      + 2 * adj_p.size * 2   # adj streamed once per layer pass
                      + n_pad * p * 4)

    out = pl.pallas_call(
        kernel,
        out_shape=jax.ShapeDtypeStruct((n_pad, p), jnp.float32),
        grid=(2, r_tiles, k_tiles),
        in_specs=[
            pl.BlockSpec((n_pad, f_pad), lambda l, i, k: (0, 0)),  # x (resident)
            pl.BlockSpec((f_pad, p), lambda l, i, k: (0, 0)),      # W1
            pl.BlockSpec((1, p), lambda l, i, k: (0, 0)),          # b1
            pl.BlockSpec((p, p), lambda l, i, k: (0, 0)),          # W2
            pl.BlockSpec((1, p), lambda l, i, k: (0, 0)),          # b2
            pl.BlockSpec((tm, tk), lambda l, i, k: (i, k)),        # adj tile
        ],
        out_specs=pl.BlockSpec((tm, p), lambda l, i, k: (i, 0)),
        scratch_shapes=[
            pltpu.VMEM((n_pad, p), jnp.bfloat16),   # S1 = X @ W1
            pltpu.VMEM((n_pad, p), jnp.bfloat16),   # S2 = H1 @ W2 (no HBM trip)
            pltpu.VMEM((tm, p), jnp.float32),       # f32 accumulator
        ],
        compiler_params=pltpu.CompilerParams(
            # Layer axis must fully complete before layer 1 (S2 lives in a
            # per-core VMEM scratch) and the output row blocks are revisited
            # across layers, so all axes stay "arbitrary".
            dimension_semantics=("arbitrary", "arbitrary", "arbitrary"),
            vmem_limit_bytes=32 * 1024 * 1024,
        ),
        cost_estimate=pl.CostEstimate(
            flops=flops, transcendentals=0, bytes_accessed=bytes_accessed),
    )(x_p, w1_p, b1_p, w2_p, b2_p, adj_p)

    return out[:n, :nclass]


def init_gc_params(key, f_in, f_out):
    """Deterministic init matching GraphConvolution.reset_parameters():
    uniform(-stdv, stdv) with stdv = 1/sqrt(f_out)."""
    stdv = 1.0 / math.sqrt(f_out)
    kw, kb = jax.random.split(key)
    w = jax.random.uniform(kw, (f_in, f_out), jnp.float32, -stdv, stdv)
    b = jax.random.uniform(kb, (f_out,), jnp.float32, -stdv, stdv)
    return w, b


def gcn_forward(x_tuple, _, adj, _1, params):
    """Mirror of GCN.forward(x, _, adj, _1) -> (logits, None, None)."""
    (w1, b1), (w2, b2) = params
    x = x_tuple[0]
    # F.dropout(..., training=False) is identity in inference mode.
    logits = fused_gcn(x, adj, w1, b1, w2, b2)
    return (logits, None, None)


if __name__ == "__main__":
    # Small shapes implied by the module: N nodes, nfeat -> nhid -> nclass.
    N, NFEAT, NHID, NCLASS = 128, 64, 32, 16

    key = jax.random.PRNGKey(0)
    kx, kadj, k1, k2 = jax.random.split(key, 4)

    x = jax.random.normal(kx, (N, NFEAT), jnp.float32)

    # Symmetric row-normalized adjacency with self loops (dense).
    a = (jax.random.uniform(kadj, (N, N)) < 0.05).astype(jnp.float32)
    a = jnp.maximum(a, a.T) + jnp.eye(N, dtype=jnp.float32)
    adj = a / jnp.sum(a, axis=1, keepdims=True)

    params = (init_gc_params(k1, NFEAT, NHID), init_gc_params(k2, NHID, NCLASS))

    logits, _, _ = gcn_forward((x,), None, adj, None, params)
    logits = jax.block_until_ready(logits)

    # Reference check in plain JAX (f32). The kernel uses bf16 MXU operands
    # with f32 accumulation, so the tolerance is relaxed accordingly.
    (w1, b1), (w2, b2) = params
    ref = adj @ jnp.maximum(adj @ (x @ w1) + b1, 0.0) @ w2 + b2
    assert logits.shape == (N, NCLASS)
    max_err = float(jnp.max(jnp.abs(logits - ref)))
    assert jnp.allclose(logits, ref, atol=3e-2, rtol=3e-2), max_err

    print("KERNEL_OK")
</pallas_src>

<mosaic_0001>
module attributes {stable_mosaic.version = 11 : i64} {
  func.func @_fused_gcn_kernel(%arg0: i32, %arg1: i32, %arg2: i32, %arg3: memref<128x128xbf16, #tpu.memory_space<vmem>>, %arg4: memref<128x128xbf16, #tpu.memory_space<vmem>>, %arg5: memref<1x128xf32, #tpu.memory_space<vmem>>, %arg6: memref<128x128xbf16, #tpu.memory_space<vmem>>, %arg7: memref<1x128xf32, #tpu.memory_space<vmem>>, %arg8: memref<128x128xbf16, #tpu.memory_space<vmem>>, %arg9: memref<128x128xf32, #tpu.memory_space<vmem>>, %arg10: memref<128x128xbf16, #tpu.memory_space<vmem>>, %arg11: memref<128x128xbf16, #tpu.memory_space<vmem>>, %arg12: memref<128x128xf32, #tpu.memory_space<vmem>>) attributes {dimension_semantics = [#tpu.dimension_semantics<arbitrary>, #tpu.dimension_semantics<arbitrary>, #tpu.dimension_semantics<arbitrary>], iteration_bounds = array<i64: 2, 1, 1>, scalar_prefetch = 0 : i64, scratch_operands = 3 : i64, tpu.core_type = #tpu.core_type<tc>, window_params = [{pipeline_mode = #tpu.pipeline_mode<synchronous>, transform_indices = @transform_0, window_bounds = array<i64: 128, 128>}, {pipeline_mode = #tpu.pipeline_mode<synchronous>, transform_indices = @transform_1, window_bounds = array<i64: 128, 128>}, {pipeline_mode = #tpu.pipeline_mode<synchronous>, transform_indices = @transform_2, window_bounds = array<i64: 1, 128>}, {pipeline_mode = #tpu.pipeline_mode<synchronous>, transform_indices = @transform_3, window_bounds = array<i64: 128, 128>}, {pipeline_mode = #tpu.pipeline_mode<synchronous>, transform_indices = @transform_4, window_bounds = array<i64: 1, 128>}, {transform_indices = @transform_5, window_bounds = array<i64: 128, 128>}, {transform_indices = @transform_6, window_bounds = array<i64: 128, 128>}]} {
    %c0_i32 = arith.constant 0 : i32
    %0 = arith.cmpi eq, %arg0, %c0_i32 : i32
    %c0_i32_0 = arith.constant 0 : i32
    %1 = arith.cmpi eq, %arg1, %c0_i32_0 : i32
    %2 = arith.andi %0, %1 : i1
    %c0_i32_1 = arith.constant 0 : i32
    %3 = arith.cmpi eq, %arg2, %c0_i32_1 : i32
    %4 = arith.andi %2, %3 : i1
    %5 = arith.extui %4 : i1 to i32
    %c0_i32_2 = arith.constant 0 : i32
    %6 = arith.cmpi ne, %5, %c0_i32_2 : i32
    scf.if %6 {
      %c0 = arith.constant 0 : index
      %c0_14 = arith.constant 0 : index
      %28 = vector.load %arg3[%c0, %c0_14] : memref<128x128xbf16, #tpu.memory_space<vmem>>, vector<128x128xbf16>
      %c0_15 = arith.constant 0 : index
      %c0_16 = arith.constant 0 : index
      %29 = vector.load %arg4[%c0_15, %c0_16] : memref<128x128xbf16, #tpu.memory_space<vmem>>, vector<128x128xbf16>
      %cst = arith.constant dense<0.000000e+00> : vector<128x128xf32>
      %30 = tpu.matmul %28, %29, %cst {dimension_numbers = #tpu.dot_dimension_numbers<[1], [0], [0], [1], [0, 0, 1, 1], [], []>} : vector<128x128xbf16>, vector<128x128xbf16>, vector<128x128xf32> -> vector<128x128xf32>
      %31 = arith.truncf %30 : vector<128x128xf32> to vector<128x128xbf16>
      %c0_17 = arith.constant 0 : index
      %c0_18 = arith.constant 0 : index
      %32 = vector.load %arg10[%c0_17, %c0_18] : memref<128x128xbf16, #tpu.memory_space<vmem>>, vector<128x128xbf16>
      tpu.vector_store %arg10[%c0_17, %c0_18], %31 {strides = array<i32>} : memref<128x128xbf16, #tpu.memory_space<vmem>>, vector<128x128xbf16>,
    } else {
    }
    %c0_i32_3 = arith.constant 0 : i32
    %7 = arith.cmpi eq, %arg2, %c0_i32_3 : i32
    %8 = arith.extui %7 : i1 to i32
    %c0_i32_4 = arith.constant 0 : i32
    %9 = arith.cmpi ne, %8, %c0_i32_4 : i32
    scf.if %9 {
      %cst = arith.constant 0.000000e+00 : f32
      %28 = vector.broadcast %cst : f32 to vector<128x128xf32>
      %c0 = arith.constant 0 : index
      %c0_14 = arith.constant 0 : index
      %29 = vector.load %arg12[%c0, %c0_14] : memref<128x128xf32, #tpu.memory_space<vmem>>, vector<128x128xf32>
      tpu.vector_store %arg12[%c0, %c0_14], %28 {strides = array<i32>} : memref<128x128xf32, #tpu.memory_space<vmem>>, vector<128x128xf32>,
    } else {
    }
    %c128_i32 = arith.constant 128 : i32
    %10 = arith.muli %arg2, %c128_i32 : i32
    %11 = tpu.assume_multiple %10, 128 : i32
    %c0_i32_5 = arith.constant 0 : i32
    %12 = arith.cmpi eq, %arg0, %c0_i32_5 : i32
    %13 = arith.extui %12 : i1 to i32
    %c0_i32_6 = arith.constant 0 : i32
    %14 = arith.cmpi ne, %13, %c0_i32_6 : i32
    scf.if %14 {
      %c0 = arith.constant 0 : index
      %c0_14 = arith.constant 0 : index
      %28 = vector.load %arg12[%c0, %c0_14] : memref<128x128xf32, #tpu.memory_space<vmem>>, vector<128x128xf32>
      %c0_15 = arith.constant 0 : index
      %c0_16 = arith.constant 0 : index
      %29 = vector.load %arg8[%c0_15, %c0_16] : memref<128x128xbf16, #tpu.memory_space<vmem>>, vector<128x128xbf16>
      %30 = arith.index_cast %11 : i32 to index
      %c0_17 = arith.constant 0 : index
      %31 = vector.load %arg10[%30, %c0_17] : memref<128x128xbf16, #tpu.memory_space<vmem>>, vector<128x128xbf16>
      %cst = arith.constant dense<0.000000e+00> : vector<128x128xf32>
      %32 = tpu.matmul %29, %31, %cst {dimension_numbers = #tpu.dot_dimension_numbers<[1], [0], [0], [1], [0, 0, 1, 1], [], []>} : vector<128x128xbf16>, vector<128x128xbf16>, vector<128x128xf32> -> vector<128x128xf32>
      %33 = arith.addf %28, %32 : vector<128x128xf32>
      %c0_18 = arith.constant 0 : index
      %c0_19 = arith.constant 0 : index
      %34 = vector.load %arg12[%c0_18, %c0_19] : memref<128x128xf32, #tpu.memory_space<vmem>>, vector<128x128xf32>
      tpu.vector_store %arg12[%c0_18, %c0_19], %33 {strides = array<i32>} : memref<128x128xf32, #tpu.memory_space<vmem>>, vector<128x128xf32>,
    } else {
    }
    %c1_i32 = arith.constant 1 : i32
    %15 = arith.cmpi eq, %arg0, %c1_i32 : i32
    %16 = arith.extui %15 : i1 to i32
    %c0_i32_7 = arith.constant 0 : i32
    %17 = arith.cmpi ne, %16, %c0_i32_7 : i32
    scf.if %17 {
      %c0 = arith.constant 0 : index
      %c0_14 = arith.constant 0 : index
      %28 = vector.load %arg12[%c0, %c0_14] : memref<128x128xf32, #tpu.memory_space<vmem>>, vector<128x128xf32>
      %c0_15 = arith.constant 0 : index
      %c0_16 = arith.constant 0 : index
      %29 = vector.load %arg8[%c0_15, %c0_16] : memref<128x128xbf16, #tpu.memory_space<vmem>>, vector<128x128xbf16>
      %30 = arith.index_cast %11 : i32 to index
      %c0_17 = arith.constant 0 : index
      %31 = vector.load %arg11[%30, %c0_17] : memref<128x128xbf16, #tpu.memory_space<vmem>>, vector<128x128xbf16>
      %cst = arith.constant dense<0.000000e+00> : vector<128x128xf32>
      %32 = tpu.matmul %29, %31, %cst {dimension_numbers = #tpu.dot_dimension_numbers<[1], [0], [0], [1], [0, 0, 1, 1], [], []>} : vector<128x128xbf16>, vector<128x128xbf16>, vector<128x128xf32> -> vector<128x128xf32>
      %33 = arith.addf %28, %32 : vector<128x128xf32>
      %c0_18 = arith.constant 0 : index
      %c0_19 = arith.constant 0 : index
      %34 = vector.load %arg12[%c0_18, %c0_19] : memref<128x128xf32, #tpu.memory_space<vmem>>, vector<128x128xf32>
      tpu.vector_store %arg12[%c0_18, %c0_19], %33 {strides = array<i32>} : memref<128x128xf32, #tpu.memory_space<vmem>>, vector<128x128xf32>,
    } else {
    }
    %c0_i32_8 = arith.constant 0 : i32
    %18 = arith.cmpi eq, %arg0, %c0_i32_8 : i32
    %c0_i32_9 = arith.constant 0 : i32
    %19 = arith.cmpi eq, %arg2, %c0_i32_9 : i32
    %20 = arith.andi %18, %19 : i1
    %21 = arith.extui %20 : i1 to i32
    %c0_i32_10 = arith.constant 0 : i32
    %22 = arith.cmpi ne, %21, %c0_i32_10 : i32
    scf.if %22 {
      %c0 = arith.constant 0 : index
      %c0_14 = arith.constant 0 : index
      %28 = vector.load %arg12[%c0, %c0_14] : memref<128x128xf32, #tpu.memory_space<vmem>>, vector<128x128xf32>
      %c0_15 = arith.constant 0 : index
      %c0_16 = arith.constant 0 : index
      %29 = vector.load %arg5[%c0_15, %c0_16] : memref<1x128xf32, #tpu.memory_space<vmem>>, vector<1x128xf32>
      %30 = vector.broadcast %29 : vector<1x128xf32> to vector<128x128xf32>
      %31 = arith.addf %28, %30 : vector<128x128xf32>
      %cst = arith.constant 0.000000e+00 : f32
      %32 = vector.broadcast %cst : f32 to vector<128x128xf32>
      %33 = arith.maximumf %31, %32 : vector<128x128xf32>
      %c128_i32_17 = arith.constant 128 : i32
      %34 = arith.muli %arg1, %c128_i32_17 : i32
      %35 = tpu.assume_multiple %34, 128 : i32
      %36 = arith.truncf %33 : vector<128x128xf32> to vector<128x128xbf16>
      %c0_18 = arith.constant 0 : index
      %c0_19 = arith.constant 0 : index
      %37 = vector.load %arg6[%c0_18, %c0_19] : memref<128x128xbf16, #tpu.memory_space<vmem>>, vector<128x128xbf16>
      %cst_20 = arith.constant dense<0.000000e+00> : vector<128x128xf32>
      %38 = tpu.matmul %36, %37, %cst_20 {dimension_numbers = #tpu.dot_dimension_numbers<[1], [0], [0], [1], [0, 0, 1, 1], [], []>} : vector<128x128xbf16>, vector<128x128xbf16>, vector<128x128xf32> -> vector<128x128xf32>
      %39 = arith.truncf %38 : vector<128x128xf32> to vector<128x128xbf16>
      %40 = arith.index_cast %35 : i32 to index
      %c0_21 = arith.constant 0 : index
      %41 = vector.load %arg11[%40, %c0_21] : memref<128x128xbf16, #tpu.memory_space<vmem>>, vector<128x128xbf16>
      tpu.vector_store %arg11[%40, %c0_21], %39 {strides = array<i32>} : memref<128x128xbf16, #tpu.memory_space<vmem>>, vector<128x128xbf16>,
      %cst_22 = arith.constant 0.000000e+00 : f32
      %42 = vector.broadcast %cst_22 : f32 to vector<128x128xf32>
      %c0_23 = arith.constant 0 : index
      %c0_24 = arith.constant 0 : index
      %43 = vector.load %arg9[%c0_23, %c0_24] : memref<128x128xf32, #tpu.memory_space<vmem>>, vector<128x128xf32>
      tpu.vector_store %arg9[%c0_23, %c0_24], %42 {strides = array<i32>} : memref<128x128xf32, #tpu.memory_space<vmem>>, vector<128x128xf32>,
    } else {
    }
    %c1_i32_11 = arith.constant 1 : i32
    %23 = arith.cmpi eq, %arg0, %c1_i32_11 : i32
    %c0_i32_12 = arith.constant 0 : i32
    %24 = arith.cmpi eq, %arg2, %c0_i32_12 : i32
    %25 = arith.andi %23, %24 : i1
    %26 = arith.extui %25 : i1 to i32
    %c0_i32_13 = arith.constant 0 : i32
    %27 = arith.cmpi ne, %26, %c0_i32_13 : i32
    scf.if %27 {
      %c0 = arith.constant 0 : index
      %c0_14 = arith.constant 0 : index
      %28 = vector.load %arg12[%c0, %c0_14] : memref<128x128xf32, #tpu.memory_space<vmem>>, vector<128x128xf32>
      %c0_15 = arith.constant 0 : index
      %c0_16 = arith.constant 0 : index
      %29 = vector.load %arg7[%c0_15, %c0_16] : memref<1x128xf32, #tpu.memory_space<vmem>>, vector<1x128xf32>
      %30 = vector.broadcast %29 : vector<1x128xf32> to vector<128x128xf32>
      %31 = arith.addf %28, %30 : vector<128x128xf32>
      %c0_17 = arith.constant 0 : index
      %c0_18 = arith.constant 0 : index
      %32 = vector.load %arg9[%c0_17, %c0_18] : memref<128x128xf32, #tpu.memory_space<vmem>>, vector<128x128xf32>
      tpu.vector_store %arg9[%c0_17, %c0_18], %31 {strides = array<i32>} : memref<128x128xf32, #tpu.memory_space<vmem>>, vector<128x128xf32>,
    } else {
    }
    return
  }
  func.func @transform_0(%arg0: i32, %arg1: i32, %arg2: i32) -> (i32, i32) {
    %c0_i32 = arith.constant 0 : i32
    %c0_i32_0 = arith.constant 0 : i32
    %c0_i32_1 = arith.constant 0 : i32
    return %c0_i32, %c0_i32_0 : i32, i32
  }
  func.func @transform_1(%arg0: i32, %arg1: i32, %arg2: i32) -> (i32, i32) {
    %c0_i32 = arith.constant 0 : i32
    %c0_i32_0 = arith.constant 0 : i32
    %c0_i32_1 = arith.constant 0 : i32
    return %c0_i32, %c0_i32_0 : i32, i32
  }
  func.func @transform_2(%arg0: i32, %arg1: i32, %arg2: i32) -> (i32, i32) {
    %c0_i32 = arith.constant 0 : i32
    %c0_i32_0 = arith.constant 0 : i32
    %c0_i32_1 = arith.constant 0 : i32
    return %c0_i32, %c0_i32_0 : i32, i32
  }
  func.func @transform_3(%arg0: i32, %arg1: i32, %arg2: i32) -> (i32, i32) {
    %c0_i32 = arith.constant 0 : i32
    %c0_i32_0 = arith.constant 0 : i32
    %c0_i32_1 = arith.constant 0 : i32
    return %c0_i32, %c0_i32_0 : i32, i32
  }
  func.func @transform_4(%arg0: i32, %arg1: i32, %arg2: i32) -> (i32, i32) {
    %c0_i32 = arith.constant 0 : i32
    %c0_i32_0 = arith.constant 0 : i32
    %c0_i32_1 = arith.constant 0 : i32
    return %c0_i32, %c0_i32_0 : i32, i32
  }
  func.func @transform_5(%arg0: i32, %arg1: i32, %arg2: i32) -> (i32, i32) {
    %c0_i32 = arith.constant 0 : i32
    return %arg1, %arg2 : i32, i32
  }
  func.func @transform_6(%arg0: i32, %arg1: i32, %arg2: i32) -> (i32, i32) {
    %c0_i32 = arith.constant 0 : i32
    %c0_i32_0 = arith.constant 0 : i32
    return %arg1, %c0_i32 : i32, i32
  }
}

</mosaic_0001>

<llo_original>
// kernel: tpu_custom_call.1
$region0: #{tpu_custom_call.1}
  #allocation0 [shape = 'u32[]', space=smem, size = 0x4, offset = 0x4, fixed_abs, tag = 'smem constant byte address 0x4 - core index']
  #allocation1 [shape = 'u32[144,128]{1,0:T(1,128)}', space=vmem, size = 0x12000, scoped, tag = 'internal scratch']
  #allocation2 [shape = 'bf16[128,128]{1,0:T(8,128)(2,1)}', space=vmem, size = 0x8000, scoped, tag = 'scratch operand']
  #allocation3 [shape = 'bf16[128,128]{1,0:T(8,128)(2,1)}', space=vmem, size = 0x8000, scoped, tag = 'scratch operand']
  #allocation4 [shape = 'f32[128,128]{1,0:T(8,128)}', space=vmem, size = 0x10000, scoped, tag = 'scratch operand']
  %s0 = inlined_call_operand.hbm [shape: bf16[128,128], index: 0, kind: input, shape index: {}]
  %s1 = inlined_call_operand.hbm [shape: bf16[128,128], index: 1, kind: input, shape index: {}]
  %s2 = inlined_call_operand.vmem [shape: f32[1,128], index: 2, kind: input, shape index: {}]
  %s3 = inlined_call_operand.hbm [shape: bf16[128,128], index: 3, kind: input, shape index: {}]
  %s4 = inlined_call_operand.vmem [shape: f32[1,128], index: 4, kind: input, shape index: {}]
  %s5 = inlined_call_operand.hbm [shape: bf16[128,128], index: 5, kind: input, shape index: {}]
  %s6 = inlined_call_operand.hbm [shape: f32[128,128], index: 6, kind: output, shape index: {}]
  %s7 = sld [smem:[#allocation0]]
  $region97: #{tpu_custom_call.1} parent=0
    _
  %s9 = ssub.s32 1, %s7
  %s10 = scalar_select 0, %s9, %s7
  $region1: #{tpu_custom_call.1} parent=0
    #allocation5 [shape = 'u8[32768]{0}', space=vmem, size = 0x8000, scoped, tag = 'input window, operand 0, single buffered']
    #allocation6 [shape = 's32[2]{0}', space=sflag, size = 0x8, scoped, tag = 'scoped memory for tpu_custom_call.1']
    #allocation7 [shape = 's32[2]{0}', space=sflag, size = 0x8, scoped, tag = 'scoped memory for tpu_custom_call.1']
    #allocation8 [shape = 'u8[32768]{0}', space=vmem, size = 0x8000, scoped, tag = 'input window, operand 1, single buffered']
    #allocation9 [shape = 's32[1]{0}', space=sflag, size = 0x4, scoped, tag = 'scoped memory for tpu_custom_call.1']
    #allocation10 [shape = 'u8[32768]{0}', space=vmem, size = 0x8000, scoped, tag = 'input window, operand 3, single buffered']
    #allocation11 [shape = 'u8[32768]{0}', space=vmem, size = 0x8000, scoped, tag = 'input window, operand 5, single buffered']
    #allocation12 [shape = 's32[1]{0}', space=sflag, size = 0x4, scoped, tag = 'scoped memory for tpu_custom_call.1']
    #allocation13 [shape = 'u8[65536]{0}', space=vmem, size = 0x10000, scoped, tag = 'output window, operand 0, single buffered']
    %11 = vsyncpa [#allocation6], 0
    %12 = vsyncpa [#allocation9], 0
    %13 = vsyncpa [#allocation12], 0
    %14 = vsyncpa [#allocation7], 0
    loop: start=0, step=1, limit=4
    $region2: #{tpu_custom_call.1} parent=1 // loop_pre_header
      _
    $region3: #{tpu_custom_call.1} parent=1 // loop_header
      %s16 = sphi 0, %s20
      %p17 = scmp.ge.s32.totalorder %s16, 4
      %s23 = sphi 0, %s42
      %s24 = sphi 0, %s38
      %s25 = sphi 0, %s34
      %s26 = sphi 0, %s23
      %s27 = sphi 0, %s24
      %s28 = sphi 0, %s25
      %s29 = sphi 0, %s26
      %s30 = sphi 0, %s27
      %s31 = sphi 0, %s28
      %s43 = sphi 0, %s43
      %s45 = sphi 0, %s43
      %s46 = sphi 0, %s45
      %s60 = sphi 0, %s46
      %s64 = sphi 0, %s64
      %s66 = sphi 0, %s64
      %s67 = sphi 0, %s66
      %s81 = sphi 0, %s67
      %s85 = sphi 0, %s85
      %s87 = sphi 0, %s85
      %s88 = sphi 0, %s87
      %s102 = sphi 0, %s88
      %s106 = sphi 0, %s106
      %s108 = sphi 0, %s106
      %s109 = sphi 0, %s108
      %s123 = sphi 0, %s109
      %s127 = sphi 0, %s127
      %s129 = sphi 0, %s127
      %s130 = sphi 0, %s129
      %s144 = sphi 0, %s130
      %s152 = sphi 0, %s154
      %s155 = sphi 0, %s152
      %s156 = sphi 0, %s155
      %s172 = sphi 0, %s156
      %s178 = sphi 0, %s180
      %s181 = sphi 0, %s178
      %s182 = sphi 0, %s181
      %s198 = sphi 0, %s182
    $region4: #{tpu_custom_call.1} parent=1 // loop_header_branch
      %19 = sbr.rel (%p17) target = $region8
    $region5: #{tpu_custom_call.1} parent=1 // loop_body
      %s21 = ssub.s32 %s16, 1
      %s22 = ssub.s32 %s16, 2
      %s32 = sadd.s32 1, %s25
      %p33 = scmp.ge.s32.totalorder %s32, 1
      %s34 = scalar_select %p33, 0, %s32
      %s35 = sadd.s32 1, %s24
      %s36 = scalar_select %p33, %s35, %s24
      %p37 = scmp.ge.s32.totalorder %s36, 1
      %s38 = scalar_select %p37, 0, %s36
      %s39 = sadd.s32 1, %s23
      %s40 = scalar_select %p37, %s39, %s23
      %p41 = scmp.ge.s32.totalorder %s40, 2
      %s42 = scalar_select %p41, 0, %s40
      %s44 = sadd.s32 %s43, 1
      %p47 = scmp.eq.s32.totalorder %s16, 1
      %p48 = scmp.ne.s32.totalorder %s43, %s45
      %p49 = scmp.eq.s32.totalorder %s16, 0
      %p50 = por %p48, %p49
      %p51 = scmp.ne.s32.totalorder %s43, %s45
      %p52 = scmp.eq.s32.totalorder %s21, 1
      %p53 = por %p51, %p52
      %p54 = scmp.ne.s32.totalorder %s45, %s46
      %p55 = scmp.eq.s32.totalorder %s21, 0
      %p56 = por %p54, %p55
      %p57 = scmp.ne.s32.totalorder %s45, %s46
      %p58 = scmp.eq.s32.totalorder %s22, 1
      %p59 = por %p57, %p58
      %p61 = scmp.ne.s32.totalorder %s46, %s60
      %p62 = scmp.eq.s32.totalorder %s22, 0
      %p63 = por %p61, %p62
      %s65 = sadd.s32 %s64, 1
      %p68 = scmp.eq.s32.totalorder %s16, 1
      %p69 = scmp.ne.s32.totalorder %s64, %s66
      %p70 = scmp.eq.s32.totalorder %s16, 0
      %p71 = por %p69, %p70
      %p72 = scmp.ne.s32.totalorder %s64, %s66
      %p73 = scmp.eq.s32.totalorder %s21, 1
      %p74 = por %p72, %p73
      %p75 = scmp.ne.s32.totalorder %s66, %s67
      %p76 = scmp.eq.s32.totalorder %s21, 0
      %p77 = por %p75, %p76
      %p78 = scmp.ne.s32.totalorder %s66, %s67
      %p79 = scmp.eq.s32.totalorder %s22, 1
      %p80 = por %p78, %p79
      %p82 = scmp.ne.s32.totalorder %s67, %s81
      %p83 = scmp.eq.s32.totalorder %s22, 0
      %p84 = por %p82, %p83
      %s86 = sadd.s32 %s85, 1
      %p89 = scmp.eq.s32.totalorder %s16, 1
      %p90 = scmp.ne.s32.totalorder %s85, %s87
      %p91 = scmp.eq.s32.totalorder %s16, 0
      %p92 = por %p90, %p91
      %p93 = scmp.ne.s32.totalorder %s85, %s87
      %p94 = scmp.eq.s32.totalorder %s21, 1
      %p95 = por %p93, %p94
      %p96 = scmp.ne.s32.totalorder %s87, %s88
      %p97 = scmp.eq.s32.totalorder %s21, 0
      %p98 = por %p96, %p97
      %p99 = scmp.ne.s32.totalorder %s87, %s88
      %p100 = scmp.eq.s32.totalorder %s22, 1
      %p101 = por %p99, %p100
      %p103 = scmp.ne.s32.totalorder %s88, %s102
      %p104 = scmp.eq.s32.totalorder %s22, 0
      %p105 = por %p103, %p104
      %s107 = sadd.s32 %s106, 1
      %p110 = scmp.eq.s32.totalorder %s16, 1
      %p111 = scmp.ne.s32.totalorder %s106, %s108
      %p112 = scmp.eq.s32.totalorder %s16, 0
      %p113 = por %p111, %p112
      %p114 = scmp.ne.s32.totalorder %s106, %s108
      %p115 = scmp.eq.s32.totalorder %s21, 1
      %p116 = por %p114, %p115
      %p117 = scmp.ne.s32.totalorder %s108, %s109
      %p118 = scmp.eq.s32.totalorder %s21, 0
      %p119 = por %p117, %p118
      %p120 = scmp.ne.s32.totalorder %s108, %s109
      %p121 = scmp.eq.s32.totalorder %s22, 1
      %p122 = por %p120, %p121
      %p124 = scmp.ne.s32.totalorder %s109, %s123
      %p125 = scmp.eq.s32.totalorder %s22, 0
      %p126 = por %p124, %p125
      %s128 = sadd.s32 %s127, 1
      %p131 = scmp.eq.s32.totalorder %s16, 1
      %p132 = scmp.ne.s32.totalorder %s127, %s129
      %p133 = scmp.eq.s32.totalorder %s16, 0
      %p134 = por %p132, %p133
      %p135 = scmp.ne.s32.totalorder %s127, %s129
      %p136 = scmp.eq.s32.totalorder %s21, 1
      %p137 = por %p135, %p136
      %p138 = scmp.ne.s32.totalorder %s129, %s130
      %p139 = scmp.eq.s32.totalorder %s21, 0
      %p140 = por %p138, %p139
      %p141 = scmp.ne.s32.totalorder %s129, %s130
      %p142 = scmp.eq.s32.totalorder %s22, 1
      %p143 = por %p141, %p142
      %p145 = scmp.ne.s32.totalorder %s130, %s144
      %p146 = scmp.eq.s32.totalorder %s22, 0
      %p147 = por %p145, %p146
      %s148 = ssub.s32 %s24, %s38
      %s149 = ssub.s32 %s25, %s34
      %s150 = sor.u32 %s148, %s149
      %p151 = scmp.eq.s32.totalorder %s150, 0
      %s153 = sadd.s32 %s152, 1
      %s154 = scalar_select %p151, %s152, %s153
      %p157 = pneg %p151
      %p158 = scmp.eq.s32.totalorder %s16, 1
      %p159 = por %p157, %p158
      %p160 = scmp.ne.s32.totalorder %s152, %s155
      %p161 = scmp.eq.s32.totalorder %s16, 0
      %p162 = por %p160, %p161
      %p163 = scmp.ne.s32.totalorder %s152, %s155
      %p164 = scmp.eq.s32.totalorder %s21, 1
      %p165 = por %p163, %p164
      %p166 = scmp.ne.s32.totalorder %s155, %s156
      %p167 = scmp.eq.s32.totalorder %s21, 0
      %p168 = por %p166, %p167
      %p169 = scmp.ne.s32.totalorder %s155, %s156
      %p170 = scmp.eq.s32.totalorder %s22, 1
      %p171 = por %p169, %p170
      %p173 = scmp.ne.s32.totalorder %s156, %s172
      %p174 = scmp.eq.s32.totalorder %s22, 0
      %p175 = por %p173, %p174
      %s176 = ssub.s32 %s24, %s38
      %p177 = scmp.eq.s32.totalorder %s176, 0
      %s179 = sadd.s32 %s178, 1
      %s180 = scalar_select %p177, %s178, %s179
      %p183 = pneg %p177
      %p184 = scmp.eq.s32.totalorder %s16, 1
      %p185 = por %p183, %p184
      %p186 = scmp.ne.s32.totalorder %s178, %s181
      %p187 = scmp.eq.s32.totalorder %s16, 0
      %p188 = por %p186, %p187
      %p189 = scmp.ne.s32.totalorder %s178, %s181
      %p190 = scmp.eq.s32.totalorder %s21, 1
      %p191 = por %p189, %p190
      %p192 = scmp.ne.s32.totalorder %s181, %s182
      %p193 = scmp.eq.s32.totalorder %s21, 0
      %p194 = por %p192, %p193
      %p195 = scmp.ne.s32.totalorder %s181, %s182
      %p196 = scmp.eq.s32.totalorder %s22, 1
      %p197 = por %p195, %p196
      %p199 = scmp.ne.s32.totalorder %s182, %s198
      %p200 = scmp.eq.s32.totalorder %s22, 0
      %p201 = por %p199, %p200
      %p202 = scmp.le.s32.totalorder 1, %s16
      %p203 = scmp.lt.s32.totalorder %s16, 3
      %p204 = pnand %p202, %p203
      %p205 = pneg %p204
      // Predicated region
      $region9: #{tpu_custom_call.1} parent=5 // pred_check
        _
      $region10: #{tpu_custom_call.1} parent=5 // pred_check_branch
        %207 = sbr.rel (%p204) target = $region12
      $region11: #{tpu_custom_call.1} parent=5 // pred_region
        %s208 = ssub.s32 %s16, 1
        // Predicated region
        $region13: #{tpu_custom_call.1} parent=11 // pred_check
          %p209 = pneg %p56
        $region14: #{tpu_custom_call.1} parent=11 // pred_check_branch
          %211 = sbr.rel (%p209) target = $region16
        $region15: #{tpu_custom_call.1} parent=11 // pred_region
          %s213 = ssub.s32 1024, 1024
          %214 = vsyncadd [#allocation6], %s213
          %s215 = sshll.u32 [#allocation5], 4
          %s216 = int_to_ptr.vmem [resolvable:$true] %s215
          %221 = dma.hbm_to_vmem [thread:$0]  %s0, 1024, %s216, [#allocation6], 64, 64, 4
        $region16: #{tpu_custom_call.1} parent=11 // pred_fallthru
          _
        // Predicated region
        $region17: #{tpu_custom_call.1} parent=11 // pred_check
          %p222 = pneg %p77
        $region18: #{tpu_custom_call.1} parent=11 // pred_check_branch
          %224 = sbr.rel (%p222) target = $region20
        $region19: #{tpu_custom_call.1} parent=11 // pred_region
          %s226 = ssub.s32 1024, 1024
          %227 = vsyncadd [#allocation9], %s226
          %s228 = sshll.u32 [#allocation8], 4
          %s229 = int_to_ptr.vmem [resolvable:$true] %s228
          %234 = dma.hbm_to_vmem [thread:$0]  %s1, 1024, %s229, [#allocation9], 64, 64, 4
        $region20: #{tpu_custom_call.1} parent=11 // pred_fallthru
          _
        // Predicated region
        $region21: #{tpu_custom_call.1} parent=11 // pred_check
          %p235 = pneg %p98
        $region22: #{tpu_custom_call.1} parent=11 // pred_check_branch
          %237 = sbr.rel (%p235) target = $region24
        $region23: #{tpu_custom_call.1} parent=11 // pred_region
          _
        $region24: #{tpu_custom_call.1} parent=11 // pred_fallthru
          _
        // Predicated region
        $region25: #{tpu_custom_call.1} parent=11 // pred_check
          %p238 = pneg %p119
        $region26: #{tpu_custom_call.1} parent=11 // pred_check_branch
          %240 = sbr.rel (%p238) target = $region28
        $region27: #{tpu_custom_call.1} parent=11 // pred_region
          %s242 = ssub.s32 1024, 1024
          %243 = vsyncadd [#allocation9], %s242
          %s244 = sshll.u32 [#allocation10], 4
          %s245 = int_to_ptr.vmem [resolvable:$true] %s244
          %250 = dma.hbm_to_vmem [thread:$0]  %s3, 1024, %s245, [#allocation9], 64, 64, 4
        $region28: #{tpu_custom_call.1} parent=11 // pred_fallthru
          _
        // Predicated region
        $region29: #{tpu_custom_call.1} parent=11 // pred_check
          %p251 = pneg %p140
        $region30: #{tpu_custom_call.1} parent=11 // pred_check_branch
          %253 = sbr.rel (%p251) target = $region32
        $region31: #{tpu_custom_call.1} parent=11 // pred_region
          _
        $region32: #{tpu_custom_call.1} parent=11 // pred_fallthru
          _
        // Predicated region
        $region33: #{tpu_custom_call.1} parent=11 // pred_check
          %p254 = pneg %p168
        $region34: #{tpu_custom_call.1} parent=11 // pred_check_branch
          %256 = sbr.rel (%p254) target = $region36
        $region35: #{tpu_custom_call.1} parent=11 // pred_region
          %s257 = smul.u32 16, %s27
          %s259 = ssub.s32 1024, 1024
          %260 = vsyncadd [#allocation12], %s259
          %s261 = sadd.s32 %s28, %s257
          %s262 = smul.addr %s261, 64
          %s263 = scalar_lea.hbm %s5, %s262
          %s264 = sshll.u32 [#allocation11], 4
          %s265 = int_to_ptr.vmem [resolvable:$true] %s264
          %270 = dma.hbm_to_vmem [thread:$0]  %s263, 1024, %s265, [#allocation12], 64, 64, 4
        $region36: #{tpu_custom_call.1} parent=11 // pred_fallthru
          _
      $region12: #{tpu_custom_call.1} parent=5 // pred_fallthru
        _
      %p271 = scmp.lt.s32.totalorder %s16, 2
      // Predicated region
      $region37: #{tpu_custom_call.1} parent=5 // pred_check
        %p272 = pneg %p271
      $region38: #{tpu_custom_call.1} parent=5 // pred_check_branch
        %274 = sbr.rel (%p272) target = $region40
      $region39: #{tpu_custom_call.1} parent=5 // pred_region
        _
      $region40: #{tpu_custom_call.1} parent=5 // pred_fallthru
        _
      %p275 = scmp.le.s32.totalorder 1, %s16
      %p276 = scmp.lt.s32.totalorder %s16, 3
      %p277 = pnand %p275, %p276
      %p278 = pneg %p277
      // Predicated region
      $region41: #{tpu_custom_call.1} parent=5 // pred_check
        _
      $region42: #{tpu_custom_call.1} parent=5 // pred_check_branch
        %280 = sbr.rel (%p277) target = $region44
      $region43: #{tpu_custom_call.1} parent=5 // pred_region
        %s281 = ssub.s32 %s16, 1
        // Predicated region
        $region45: #{tpu_custom_call.1} parent=43 // pred_check
          %p282 = pneg %p56
        $region46: #{tpu_custom_call.1} parent=43 // pred_check_branch
          %284 = sbr.rel (%p282) target = $region48
        $region47: #{tpu_custom_call.1} parent=43 // pred_region
          %285 = dma.done [#allocation6], 1024
        $region48: #{tpu_custom_call.1} parent=43 // pred_fallthru
          _
        // Predicated region
        $region49: #{tpu_custom_call.1} parent=43 // pred_check
          %p286 = pneg %p77
        $region50: #{tpu_custom_call.1} parent=43 // pred_check_branch
          %288 = sbr.rel (%p286) target = $region52
        $region51: #{tpu_custom_call.1} parent=43 // pred_region
          %289 = dma.done [#allocation9], 1024
        $region52: #{tpu_custom_call.1} parent=43 // pred_fallthru
          _
        // Predicated region
        $region53: #{tpu_custom_call.1} parent=43 // pred_check
          %p290 = pneg %p119
        $region54: #{tpu_custom_call.1} parent=43 // pred_check_branch
          %292 = sbr.rel (%p290) target = $region56
        $region55: #{tpu_custom_call.1} parent=43 // pred_region
          %293 = dma.done [#allocation9], 1024
        $region56: #{tpu_custom_call.1} parent=43 // pred_fallthru
          _
        // Predicated region
        $region57: #{tpu_custom_call.1} parent=43 // pred_check
          %p294 = pneg %p168
        $region58: #{tpu_custom_call.1} parent=43 // pred_check_branch
          %296 = sbr.rel (%p294) target = $region60
        $region59: #{tpu_custom_call.1} parent=43 // pred_region
          %297 = dma.done [#allocation12], 1024
        $region60: #{tpu_custom_call.1} parent=43 // pred_fallthru
          _
        %p298 = pneg %p56
        %p299 = pneg %p53
        %p300 = pneg %p77
        %p301 = pneg %p74
        %p302 = pneg %p98
        %p303 = pneg %p95
        %p304 = pneg %p119
        %p305 = pneg %p116
        %p306 = pneg %p140
        %p307 = pneg %p137
        %p308 = pneg %p168
        %p309 = pneg %p165
        %p310 = pneg %p194
        %p311 = pneg %p191
        %s312 = smul.u32 16, %s27
        %s313 = smul.u32 16, %s27
        %p315 = scmp.eq.s32.totalorder %s26, 0
        %p316 = scmp.eq.s32.totalorder %s27, 0
        %p317 = pnand %p315, %p316
        %p318 = pneg %p317
        %p319 = scmp.eq.s32.totalorder %s28, 0
        %p320 = pnand %p318, %p319
        %p321 = pneg %p320
        // Predicated region
        $region61: #{tpu_custom_call.1} parent=43 // pred_check
          _
        $region62: #{tpu_custom_call.1} parent=43 // pred_check_branch
          %323 = sbr.rel (%p320) target = $region64
        $region63: #{tpu_custom_call.1} parent=43 // pred_region
          %v324 = vld [vmem:[#allocation5] sm:$0xf]
          %v325 = vld [vmem:[#allocation5 + $0x4] sm:$0xf]
          %v326 = vld [vmem:[#allocation5 + $0x8] sm:$0xf]
          %v327 = vld [vmem:[#allocation5 + $0xc] sm:$0xf]
          %v328 = vld [vmem:[#allocation5 + $0x10] sm:$0xf]
          %v329 = vld [vmem:[#allocation5 + $0x14] sm:$0xf]
          %v330 = vld [vmem:[#allocation5 + $0x18] sm:$0xf]
          %v331 = vld [vmem:[#allocation5 + $0x1c] sm:$0xf]
          %v332 = vld [vmem:[#allocation5 + $0x20] sm:$0xf]
          %v333 = vld [vmem:[#allocation5 + $0x24] sm:$0xf]
          %v334 = vld [vmem:[#allocation5 + $0x28] sm:$0xf]
          %v335 = vld [vmem:[#allocation5 + $0x2c] sm:$0xf]
          %v336 = vld [vmem:[#allocation5 + $0x30] sm:$0xf]
          %v337 = vld [vmem:[#allocation5 + $0x34] sm:$0xf]
          %v338 = vld [vmem:[#allocation5 + $0x38] sm:$0xf]
          %v339 = vld [vmem:[#allocation5 + $0x3c] sm:$0xf]
          %v340 = vld [vmem:[#allocation8] sm:$0xf]
          %v341 = vld [vmem:[#allocation8 + $0x4] sm:$0xf]
          %v342 = vld [vmem:[#allocation8 + $0x8] sm:$0xf]
          %v343 = vld [vmem:[#allocation8 + $0xc] sm:$0xf]
          %v344 = vld [vmem:[#allocation8 + $0x10] sm:$0xf]
          %v345 = vld [vmem:[#allocation8 + $0x14] sm:$0xf]
          %v346 = vld [vmem:[#allocation8 + $0x18] sm:$0xf]
          %v347 = vld [vmem:[#allocation8 + $0x1c] sm:$0xf]
          %v348 = vld [vmem:[#allocation8 + $0x20] sm:$0xf]
          %v349 = vld [vmem:[#allocation8 + $0x24] sm:$0xf]
          %v350 = vld [vmem:[#allocation8 + $0x28] sm:$0xf]
          %v351 = vld [vmem:[#allocation8 + $0x2c] sm:$0xf]
          %v352 = vld [vmem:[#allocation8 + $0x30] sm:$0xf]
          %v353 = vld [vmem:[#allocation8 + $0x34] sm:$0xf]
          %v354 = vld [vmem:[#allocation8 + $0x38] sm:$0xf]
          %v355 = vld [vmem:[#allocation8 + $0x3c] sm:$0xf]
          %v372 = vunpack.c.l.b16 %v324
          %v373 = vunpack.c.l.b16 %v325
          %v374 = vunpack.c.l.b16 %v326
          %v375 = vunpack.c.l.b16 %v327
          %v376 = vunpack.c.l.b16 %v328
          %v377 = vunpack.c.l.b16 %v329
          %v378 = vunpack.c.l.b16 %v330
          %v379 = vunpack.c.l.b16 %v331
          %v380 = vunpack.c.l.b16 %v332
          %v381 = vunpack.c.l.b16 %v333
          %v382 = vunpack.c.l.b16 %v334
          %v383 = vunpack.c.l.b16 %v335
          %v384 = vunpack.c.l.b16 %v336
          %v385 = vunpack.c.l.b16 %v337
          %v386 = vunpack.c.l.b16 %v338
          %v387 = vunpack.c.l.b16 %v339
          %v388 = vpack.c.b16 %v373, %v372
          %v389 = vpack.c.b16 %v375, %v374
          %v390 = vpack.c.b16 %v377, %v376
          %v391 = vpack.c.b16 %v379, %v378
          %v392 = vpack.c.b16 %v381, %v380
          %v393 = vpack.c.b16 %v383, %v382
          %v394 = vpack.c.b16 %v385, %v384
          %v395 = vpack.c.b16 %v387, %v386
          %v420 = vunpack.c.l.b16 %v340
          %v421 = vunpack.c.l.b16 %v341
          %v422 = vunpack.c.l.b16 %v342
          %v423 = vunpack.c.l.b16 %v343
          %v424 = vunpack.c.l.b16 %v344
          %v425 = vunpack.c.l.b16 %v345
          %v426 = vunpack.c.l.b16 %v346
          %v427 = vunpack.c.l.b16 %v347
          %v428 = vunpack.c.l.b16 %v348
          %v429 = vunpack.c.l.b16 %v349
          %v430 = vunpack.c.l.b16 %v350
          %v431 = vunpack.c.l.b16 %v351
          %v432 = vunpack.c.l.b16 %v352
          %v433 = vunpack.c.l.b16 %v353
          %v434 = vunpack.c.l.b16 %v354
          %v435 = vunpack.c.l.b16 %v355
          %v436 = vpack.c.b16 %v421, %v420
          %v437 = vpack.c.b16 %v423, %v422
          %v438 = vpack.c.b16 %v425, %v424
          %v439 = vpack.c.b16 %v427, %v426
          %v440 = vpack.c.b16 %v429, %v428
          %v441 = vpack.c.b16 %v431, %v430
          %v442 = vpack.c.b16 %v433, %v432
          %v443 = vpack.c.b16 %v435, %v434
          %452 = vmatprep.subr.bf16.mxu0 0
          %453 = vmatpush1.bf16.msra.mxu0 %v443
          %454 = vmatprep.subr.bf16.mxu0 0
          %455 = vmatpush1.bf16.msra.mxu0 %v442
          %456 = vmatprep.subr.bf16.mxu0 0
          %457 = vmatpush1.bf16.msra.mxu0 %v441
          %458 = vmatprep.subr.bf16.mxu0 0
          %459 = vmatpush1.bf16.msra.mxu0 %v440
          %460 = vmatprep.subr.bf16.mxu0 0
          %461 = vmatpush1.bf16.msra.mxu0 %v439
          %462 = vmatprep.subr.bf16.mxu0 0
          %463 = vmatpush1.bf16.msra.mxu0 %v438
          %464 = vmatprep.subr.bf16.mxu0 0
          %465 = vmatpush1.bf16.msra.mxu0 %v437
          %466 = vmatprep.subr.bf16.mxu0 0
          %467 = vmatpush1.bf16.msra.mxu0 %v436
          %468 = vmatprep.subr.bf16.mxu0 0
          %469 = vmatpush2.bf16.msra.mxu0 0
          %470 = vmatprep.subr.bf16.mxu0 0
          %471 = vmatpush2.bf16.msra.mxu0 0
          %472 = vmatprep.subr.bf16.mxu0 0
          %473 = vmatpush2.bf16.msra.mxu0 0
          %474 = vmatprep.subr.bf16.mxu0 0
          %475 = vmatpush2.bf16.msra.mxu0 0
          %476 = vmatprep.subr.bf16.mxu0 0
          %477 = vmatpush2.bf16.msra.mxu0 0
          %478 = vmatprep.subr.bf16.mxu0 0
          %479 = vmatpush2.bf16.msra.mxu0 0
          %480 = vmatprep.subr.bf16.mxu0 0
          %481 = vmatpush2.bf16.msra.mxu0 0
          %482 = vmatprep.subr.bf16.mxu0 0
          %483 = vmatpush2.bf16.msra.mxu0 0
          %484 = vmatprep.mubr.bf16.mxu0 0
          %485 = vmatmul.mubr.bf16.gmra.mxu0 %v388
          %v486 = vpop.f32.mrf.mxu0
          %v487 = vadd.f32 0.0, %v486
          %v488 = vpop.f32.mrf.mxu0
          %v489 = vpop.f32.mrf.mxu0
          %v490 = vadd.f32 0.0, %v489
          %v491 = vpop.f32.mrf.mxu0
          %492 = vmatprep.mubr.bf16.mxu0 0
          %493 = vmatmul.mubr.bf16.gmra.mxu0 %v389
          %v494 = vpop.f32.mrf.mxu0
          %v495 = vadd.f32 0.0, %v494
          %v496 = vpop.f32.mrf.mxu0
          %v497 = vpop.f32.mrf.mxu0
          %v498 = vadd.f32 0.0, %v497
          %v499 = vpop.f32.mrf.mxu0
          %500 = vmatprep.mubr.bf16.mxu0 0
          %501 = vmatmul.mubr.bf16.gmra.mxu0 %v390
          %v502 = vpop.f32.mrf.mxu0
          %v503 = vadd.f32 0.0, %v502
          %v504 = vpop.f32.mrf.mxu0
          %v505 = vpop.f32.mrf.mxu0
          %v506 = vadd.f32 0.0, %v505
          %v507 = vpop.f32.mrf.mxu0
          %508 = vmatprep.mubr.bf16.mxu0 0
          %509 = vmatmul.mubr.bf16.gmra.mxu0 %v391
          %v510 = vpop.f32.mrf.mxu0
          %v511 = vadd.f32 0.0, %v510
          %v512 = vpop.f32.mrf.mxu0
          %v513 = vpop.f32.mrf.mxu0
          %v514 = vadd.f32 0.0, %v513
          %v515 = vpop.f32.mrf.mxu0
          %516 = vmatprep.mubr.bf16.mxu0 0
          %517 = vmatmul.mubr.bf16.gmra.mxu0 %v392
          %v518 = vpop.f32.mrf.mxu0
          %v519 = vadd.f32 0.0, %v518
          %v520 = vpop.f32.mrf.mxu0
          %v521 = vpop.f32.mrf.mxu0
          %v522 = vadd.f32 0.0, %v521
          %v523 = vpop.f32.mrf.mxu0
          %524 = vmatprep.mubr.bf16.mxu0 0
          %525 = vmatmul.mubr.bf16.gmra.mxu0 %v393
          %v526 = vpop.f32.mrf.mxu0
          %v527 = vadd.f32 0.0, %v526
          %v528 = vpop.f32.mrf.mxu0
          %v529 = vpop.f32.mrf.mxu0
          %v530 = vadd.f32 0.0, %v529
          %v531 = vpop.f32.mrf.mxu0
          %532 = vmatprep.mubr.bf16.mxu0 0
          %533 = vmatmul.mubr.bf16.gmra.mxu0 %v394
          %v534 = vpop.f32.mrf.mxu0
          %v535 = vadd.f32 0.0, %v534
          %v536 = vpop.f32.mrf.mxu0
          %v537 = vpop.f32.mrf.mxu0
          %v538 = vadd.f32 0.0, %v537
          %v539 = vpop.f32.mrf.mxu0
          %540 = vmatprep.mubr.bf16.mxu0 0
          %541 = vmatmul.mubr.bf16.gmra.mxu0 %v395
          %v542 = vpop.f32.mrf.mxu0
          %v543 = vadd.f32 0.0, %v542
          %v544 = vpop.f32.mrf.mxu0
          %v545 = vpop.f32.mrf.mxu0
          %v546 = vadd.f32 0.0, %v545
          %v547 = vpop.f32.mrf.mxu0
          %548 = vdwg.mxu0
          %v549 = vpack.c.bf16 %v490, %v487
          %v550 = vpack.c.bf16 %v498, %v495
          %v551 = vpack.c.bf16 %v506, %v503
          %v552 = vpack.c.bf16 %v514, %v511
          %v553 = vpack.c.bf16 %v522, %v519
          %v554 = vpack.c.bf16 %v530, %v527
          %v555 = vpack.c.bf16 %v538, %v535
          %v556 = vpack.c.bf16 %v546, %v543
          %v565 = vunpack.c.l.b16 %v549
          %v566 = vunpack.c.h.b16 %v549
          %v567 = vunpack.c.l.b16 %v550
          %v568 = vunpack.c.h.b16 %v550
          %v569 = vunpack.c.l.b16 %v551
          %v570 = vunpack.c.h.b16 %v551
          %v571 = vunpack.c.l.b16 %v552
          %v572 = vunpack.c.h.b16 %v552
          %v573 = vunpack.c.l.b16 %v553
          %v574 = vunpack.c.h.b16 %v553
          %v575 = vunpack.c.l.b16 %v554
          %v576 = vunpack.c.h.b16 %v554
          %v577 = vunpack.c.l.b16 %v555
          %v578 = vunpack.c.h.b16 %v555
          %v579 = vunpack.c.l.b16 %v556
          %v580 = vunpack.c.h.b16 %v556
          %v581 = vpack.c.b16 %v565, %v565
          %v582 = vpack.c.b16 %v566, %v566
          %v583 = vpack.c.b16 %v567, %v567
          %v584 = vpack.c.b16 %v568, %v568
          %v585 = vpack.c.b16 %v569, %v569
          %v586 = vpack.c.b16 %v570, %v570
          %v587 = vpack.c.b16 %v571, %v571
          %v588 = vpack.c.b16 %v572, %v572
          %v589 = vpack.c.b16 %v573, %v573
          %v590 = vpack.c.b16 %v574, %v574
          %v591 = vpack.c.b16 %v575, %v575
          %v592 = vpack.c.b16 %v576, %v576
          %v593 = vpack.c.b16 %v577, %v577
          %v594 = vpack.c.b16 %v578, %v578
          %v595 = vpack.c.b16 %v579, %v579
          %v596 = vpack.c.b16 %v580, %v580
          %613 = vst [vmem:[#allocation2] sm:$0xf] %v581
          %614 = vst [vmem:[#allocation2 + $0x4] sm:$0xf] %v582
          %615 = vst [vmem:[#allocation2 + $0x8] sm:$0xf] %v583
          %616 = vst [vmem:[#allocation2 + $0xc] sm:$0xf] %v584
          %617 = vst [vmem:[#allocation2 + $0x10] sm:$0xf] %v585
          %618 = vst [vmem:[#allocation2 + $0x14] sm:$0xf] %v586
          %619 = vst [vmem:[#allocation2 + $0x18] sm:$0xf] %v587
          %620 = vst [vmem:[#allocation2 + $0x1c] sm:$0xf] %v588
          %621 = vst [vmem:[#allocation2 + $0x20] sm:$0xf] %v589
          %622 = vst [vmem:[#allocation2 + $0x24] sm:$0xf] %v590
          %623 = vst [vmem:[#allocation2 + $0x28] sm:$0xf] %v591
          %624 = vst [vmem:[#allocation2 + $0x2c] sm:$0xf] %v592
          %625 = vst [vmem:[#allocation2 + $0x30] sm:$0xf] %v593
          %626 = vst [vmem:[#allocation2 + $0x34] sm:$0xf] %v594
          %627 = vst [vmem:[#allocation2 + $0x38] sm:$0xf] %v595
          %628 = vst [vmem:[#allocation2 + $0x3c] sm:$0xf] %v596
        $region64: #{tpu_custom_call.1} parent=43 // pred_fallthru
          _
        // Predicated region
        $region65: #{tpu_custom_call.1} parent=43 // pred_check
          %p629 = pneg %p319
        $region66: #{tpu_custom_call.1} parent=43 // pred_check_branch
          %631 = sbr.rel (%p629) target = $region68
        $region67: #{tpu_custom_call.1} parent=43 // pred_region
          %632 = vst [vmem:[#allocation4] sm:$0xff] 0.0
          %633 = vst [vmem:[#allocation4 + $0x8] sm:$0xff] 0.0
          %634 = vst [vmem:[#allocation4 + $0x10] sm:$0xff] 0.0
          %635 = vst [vmem:[#allocation4 + $0x18] sm:$0xff] 0.0
          %636 = vst [vmem:[#allocation4 + $0x20] sm:$0xff] 0.0
          %637 = vst [vmem:[#allocation4 + $0x28] sm:$0xff] 0.0
          %638 = vst [vmem:[#allocation4 + $0x30] sm:$0xff] 0.0
          %639 = vst [vmem:[#allocation4 + $0x38] sm:$0xff] 0.0
          %640 = vst [vmem:[#allocation4 + $0x40] sm:$0xff] 0.0
          %641 = vst [vmem:[#allocation4 + $0x48] sm:$0xff] 0.0
          %642 = vst [vmem:[#allocation4 + $0x50] sm:$0xff] 0.0
          %643 = vst [vmem:[#allocation4 + $0x58] sm:$0xff] 0.0
          %644 = vst [vmem:[#allocation4 + $0x60] sm:$0xff] 0.0
          %645 = vst [vmem:[#allocation4 + $0x68] sm:$0xff] 0.0
          %646 = vst [vmem:[#allocation4 + $0x70] sm:$0xff] 0.0
          %647 = vst [vmem:[#allocation4 + $0x78] sm:$0xff] 0.0
        $region68: #{tpu_custom_call.1} parent=43 // pred_fallthru
          _
        %s648 = smul.u32 %s28, 128
        // Predicated region
        $region69: #{tpu_custom_call.1} parent=43 // pred_check
          %p649 = pneg %p315
        $region70: #{tpu_custom_call.1} parent=43 // pred_check_branch
          %651 = sbr.rel (%p649) target = $region72
        $region71: #{tpu_custom_call.1} parent=43 // pred_region
          %v652 = vld [vmem:[#allocation4] sm:$0xff]
          %v653 = vld [vmem:[#allocation4 + $0x8] sm:$0xff]
          %v654 = vld [vmem:[#allocation4 + $0x10] sm:$0xff]
          %v655 = vld [vmem:[#allocation4 + $0x18] sm:$0xff]
          %v656 = vld [vmem:[#allocation4 + $0x20] sm:$0xff]
          %v657 = vld [vmem:[#allocation4 + $0x28] sm:$0xff]
          %v658 = vld [vmem:[#allocation4 + $0x30] sm:$0xff]
          %v659 = vld [vmem:[#allocation4 + $0x38] sm:$0xff]
          %v660 = vld [vmem:[#allocation4 + $0x40] sm:$0xff]
          %v661 = vld [vmem:[#allocation4 + $0x48] sm:$0xff]
          %v662 = vld [vmem:[#allocation4 + $0x50] sm:$0xff]
          %v663 = vld [vmem:[#allocation4 + $0x58] sm:$0xff]
          %v664 = vld [vmem:[#allocation4 + $0x60] sm:$0xff]
          %v665 = vld [vmem:[#allocation4 + $0x68] sm:$0xff]
          %v666 = vld [vmem:[#allocation4 + $0x70] sm:$0xff]
          %v667 = vld [vmem:[#allocation4 + $0x78] sm:$0xff]
          %v668 = vld [vmem:[#allocation11] sm:$0xf]
          %v669 = vld [vmem:[#allocation11 + $0x4] sm:$0xf]
          %v670 = vld [vmem:[#allocation11 + $0x8] sm:$0xf]
          %v671 = vld [vmem:[#allocation11 + $0xc] sm:$0xf]
          %v672 = vld [vmem:[#allocation11 + $0x10] sm:$0xf]
          %v673 = vld [vmem:[#allocation11 + $0x14] sm:$0xf]
          %v674 = vld [vmem:[#allocation11 + $0x18] sm:$0xf]
          %v675 = vld [vmem:[#allocation11 + $0x1c] sm:$0xf]
          %v676 = vld [vmem:[#allocation11 + $0x20] sm:$0xf]
          %v677 = vld [vmem:[#allocation11 + $0x24] sm:$0xf]
          %v678 = vld [vmem:[#allocation11 + $0x28] sm:$0xf]
          %v679 = vld [vmem:[#allocation11 + $0x2c] sm:$0xf]
          %v680 = vld [vmem:[#allocation11 + $0x30] sm:$0xf]
          %v681 = vld [vmem:[#allocation11 + $0x34] sm:$0xf]
          %v682 = vld [vmem:[#allocation11 + $0x38] sm:$0xf]
          %v683 = vld [vmem:[#allocation11 + $0x3c] sm:$0xf]
          %s684 = sshra.s32 %s648, 3
          %s685 = sand.u32 %s648, 7
          %s686 = smul.addr %s684, 4
          %s687 = scalar_lea.vmem [#allocation2], %s686
          %v688 = vld [vmem:[%s687] sm:$0xf]
          %v689 = vld [vmem:[%s687 + $0x4] sm:$0xf]
          %v690 = vld [vmem:[%s687 + $0x8] sm:$0xf]
          %v691 = vld [vmem:[%s687 + $0xc] sm:$0xf]
          %v692 = vld [vmem:[%s687 + $0x10] sm:$0xf]
          %v693 = vld [vmem:[%s687 + $0x14] sm:$0xf]
          %v694 = vld [vmem:[%s687 + $0x18] sm:$0xf]
          %v695 = vld [vmem:[%s687 + $0x1c] sm:$0xf]
          %v696 = vld [vmem:[%s687 + $0x20] sm:$0xf]
          %v697 = vld [vmem:[%s687 + $0x24] sm:$0xf]
          %v698 = vld [vmem:[%s687 + $0x28] sm:$0xf]
          %v699 = vld [vmem:[%s687 + $0x2c] sm:$0xf]
          %v700 = vld [vmem:[%s687 + $0x30] sm:$0xf]
          %v701 = vld [vmem:[%s687 + $0x34] sm:$0xf]
          %v702 = vld [vmem:[%s687 + $0x38] sm:$0xf]
          %v703 = vld [vmem:[%s687 + $0x3c] sm:$0xf]
          %v720 = vunpack.c.l.b16 %v668
          %v721 = vunpack.c.l.b16 %v669
          %v722 = vunpack.c.l.b16 %v670
          %v723 = vunpack.c.l.b16 %v671
          %v724 = vunpack.c.l.b16 %v672
          %v725 = vunpack.c.l.b16 %v673
          %v726 = vunpack.c.l.b16 %v674
          %v727 = vunpack.c.l.b16 %v675
          %v728 = vunpack.c.l.b16 %v676
          %v729 = vunpack.c.l.b16 %v677
          %v730 = vunpack.c.l.b16 %v678
          %v731 = vunpack.c.l.b16 %v679
          %v732 = vunpack.c.l.b16 %v680
          %v733 = vunpack.c.l.b16 %v681
          %v734 = vunpack.c.l.b16 %v682
          %v735 = vunpack.c.l.b16 %v683
          %v736 = vpack.c.b16 %v721, %v720
          %v737 = vpack.c.b16 %v723, %v722
          %v738 = vpack.c.b16 %v725, %v724
          %v739 = vpack.c.b16 %v727, %v726
          %v740 = vpack.c.b16 %v729, %v728
          %v741 = vpack.c.b16 %v731, %v730
          %v742 = vpack.c.b16 %v733, %v732
          %v743 = vpack.c.b16 %v735, %v734
          %v768 = vunpack.c.l.b16 %v688
          %v769 = vunpack.c.l.b16 %v689
          %v770 = vunpack.c.l.b16 %v690
          %v771 = vunpack.c.l.b16 %v691
          %v772 = vunpack.c.l.b16 %v692
          %v773 = vunpack.c.l.b16 %v693
          %v774 = vunpack.c.l.b16 %v694
          %v775 = vunpack.c.l.b16 %v695
          %v776 = vunpack.c.l.b16 %v696
          %v777 = vunpack.c.l.b16 %v697
          %v778 = vunpack.c.l.b16 %v698
          %v779 = vunpack.c.l.b16 %v699
          %v780 = vunpack.c.l.b16 %v700
          %v781 = vunpack.c.l.b16 %v701
          %v782 = vunpack.c.l.b16 %v702
          %v783 = vunpack.c.l.b16 %v703
          %v784 = vpack.c.b16 %v769, %v768
          %v785 = vpack.c.b16 %v771, %v770
          %v786 = vpack.c.b16 %v773, %v772
          %v787 = vpack.c.b16 %v775, %v774
          %v788 = vpack.c.b16 %v777, %v776
          %v789 = vpack.c.b16 %v779, %v778
          %v790 = vpack.c.b16 %v781, %v780
          %v791 = vpack.c.b16 %v783, %v782
          %800 = vmatprep.subr.bf16.mxu0 0
          %801 = vmatpush1.bf16.msra.mxu0 %v791
          %802 = vmatprep.subr.bf16.mxu0 0
          %803 = vmatpush1.bf16.msra.mxu0 %v790
          %804 = vmatprep.subr.bf16.mxu0 0
          %805 = vmatpush1.bf16.msra.mxu0 %v789
          %806 = vmatprep.subr.bf16.mxu0 0
          %807 = vmatpush1.bf16.msra.mxu0 %v788
          %808 = vmatprep.subr.bf16.mxu0 0
          %809 = vmatpush1.bf16.msra.mxu0 %v787
          %810 = vmatprep.subr.bf16.mxu0 0
          %811 = vmatpush1.bf16.msra.mxu0 %v786
          %812 = vmatprep.subr.bf16.mxu0 0
          %813 = vmatpush1.bf16.msra.mxu0 %v785
          %814 = vmatprep.subr.bf16.mxu0 0
          %815 = vmatpush1.bf16.msra.mxu0 %v784
          %816 = vmatprep.subr.bf16.mxu0 0
          %817 = vmatpush2.bf16.msra.mxu0 0
          %818 = vmatprep.subr.bf16.mxu0 0
          %819 = vmatpush2.bf16.msra.mxu0 0
          %820 = vmatprep.subr.bf16.mxu0 0
          %821 = vmatpush2.bf16.msra.mxu0 0
          %822 = vmatprep.subr.bf16.mxu0 0
          %823 = vmatpush2.bf16.msra.mxu0 0
          %824 = vmatprep.subr.bf16.mxu0 0
          %825 = vmatpush2.bf16.msra.mxu0 0
          %826 = vmatprep.subr.bf16.mxu0 0
          %827 = vmatpush2.bf16.msra.mxu0 0
          %828 = vmatprep.subr.bf16.mxu0 0
          %829 = vmatpush2.bf16.msra.mxu0 0
          %830 = vmatprep.subr.bf16.mxu0 0
          %831 = vmatpush2.bf16.msra.mxu0 0
          %832 = vmatprep.mubr.bf16.mxu0 0
          %833 = vmatmul.mubr.bf16.gmra.mxu0 %v736
          %v834 = vpop.f32.mrf.mxu0
          %v835 = vadd.f32 0.0, %v834
          %v836 = vpop.f32.mrf.mxu0
          %v837 = vpop.f32.mrf.mxu0
          %v838 = vadd.f32 0.0, %v837
          %v839 = vpop.f32.mrf.mxu0
          %840 = vmatprep.mubr.bf16.mxu0 0
          %841 = vmatmul.mubr.bf16.gmra.mxu0 %v737
          %v842 = vpop.f32.mrf.mxu0
          %v843 = vadd.f32 0.0, %v842
          %v844 = vpop.f32.mrf.mxu0
          %v845 = vpop.f32.mrf.mxu0
          %v846 = vadd.f32 0.0, %v845
          %v847 = vpop.f32.mrf.mxu0
          %848 = vmatprep.mubr.bf16.mxu0 0
          %849 = vmatmul.mubr.bf16.gmra.mxu0 %v738
          %v850 = vpop.f32.mrf.mxu0
          %v851 = vadd.f32 0.0, %v850
          %v852 = vpop.f32.mrf.mxu0
          %v853 = vpop.f32.mrf.mxu0
          %v854 = vadd.f32 0.0, %v853
          %v855 = vpop.f32.mrf.mxu0
          %856 = vmatprep.mubr.bf16.mxu0 0
          %857 = vmatmul.mubr.bf16.gmra.mxu0 %v739
          %v858 = vpop.f32.mrf.mxu0
          %v859 = vadd.f32 0.0, %v858
          %v860 = vpop.f32.mrf.mxu0
          %v861 = vpop.f32.mrf.mxu0
          %v862 = vadd.f32 0.0, %v861
          %v863 = vpop.f32.mrf.mxu0
          %864 = vmatprep.mubr.bf16.mxu0 0
          %865 = vmatmul.mubr.bf16.gmra.mxu0 %v740
          %v866 = vpop.f32.mrf.mxu0
          %v867 = vadd.f32 0.0, %v866
          %v868 = vpop.f32.mrf.mxu0
          %v869 = vpop.f32.mrf.mxu0
          %v870 = vadd.f32 0.0, %v869
          %v871 = vpop.f32.mrf.mxu0
          %872 = vmatprep.mubr.bf16.mxu0 0
          %873 = vmatmul.mubr.bf16.gmra.mxu0 %v741
          %v874 = vpop.f32.mrf.mxu0
          %v875 = vadd.f32 0.0, %v874
          %v876 = vpop.f32.mrf.mxu0
          %v877 = vpop.f32.mrf.mxu0
          %v878 = vadd.f32 0.0, %v877
          %v879 = vpop.f32.mrf.mxu0
          %880 = vmatprep.mubr.bf16.mxu0 0
          %881 = vmatmul.mubr.bf16.gmra.mxu0 %v742
          %v882 = vpop.f32.mrf.mxu0
          %v883 = vadd.f32 0.0, %v882
          %v884 = vpop.f32.mrf.mxu0
          %v885 = vpop.f32.mrf.mxu0
          %v886 = vadd.f32 0.0, %v885
          %v887 = vpop.f32.mrf.mxu0
          %888 = vmatprep.mubr.bf16.mxu0 0
          %889 = vmatmul.mubr.bf16.gmra.mxu0 %v743
          %v890 = vpop.f32.mrf.mxu0
          %v891 = vadd.f32 0.0, %v890
          %v892 = vpop.f32.mrf.mxu0
          %v893 = vpop.f32.mrf.mxu0
          %v894 = vadd.f32 0.0, %v893
          %v895 = vpop.f32.mrf.mxu0
          %896 = vdwg.mxu0
          %v897 = vadd.f32 %v652, %v835
          %v898 = vadd.f32 %v653, %v838
          %v899 = vadd.f32 %v654, %v843
          %v900 = vadd.f32 %v655, %v846
          %v901 = vadd.f32 %v656, %v851
          %v902 = vadd.f32 %v657, %v854
          %v903 = vadd.f32 %v658, %v859
          %v904 = vadd.f32 %v659, %v862
          %v905 = vadd.f32 %v660, %v867
          %v906 = vadd.f32 %v661, %v870
          %v907 = vadd.f32 %v662, %v875
          %v908 = vadd.f32 %v663, %v878
          %v909 = vadd.f32 %v664, %v883
          %v910 = vadd.f32 %v665, %v886
          %v911 = vadd.f32 %v666, %v891
          %v912 = vadd.f32 %v667, %v894
          %913 = vst [vmem:[#allocation4] sm:$0xff] %v897
          %914 = vst [vmem:[#allocation4 + $0x8] sm:$0xff] %v898
          %915 = vst [vmem:[#allocation4 + $0x10] sm:$0xff] %v899
          %916 = vst [vmem:[#allocation4 + $0x18] sm:$0xff] %v900
          %917 = vst [vmem:[#allocation4 + $0x20] sm:$0xff] %v901
          %918 = vst [vmem:[#allocation4 + $0x28] sm:$0xff] %v902
          %919 = vst [vmem:[#allocation4 + $0x30] sm:$0xff] %v903
          %920 = vst [vmem:[#allocation4 + $0x38] sm:$0xff] %v904
          %921 = vst [vmem:[#allocation4 + $0x40] sm:$0xff] %v905
          %922 = vst [vmem:[#allocation4 + $0x48] sm:$0xff] %v906
          %923 = vst [vmem:[#allocation4 + $0x50] sm:$0xff] %v907
          %924 = vst [vmem:[#allocation4 + $0x58] sm:$0xff] %v908
          %925 = vst [vmem:[#allocation4 + $0x60] sm:$0xff] %v909
          %926 = vst [vmem:[#allocation4 + $0x68] sm:$0xff] %v910
          %927 = vst [vmem:[#allocation4 + $0x70] sm:$0xff] %v911
          %928 = vst [vmem:[#allocation4 + $0x78] sm:$0xff] %v912
        $region72: #{tpu_custom_call.1} parent=43 // pred_fallthru
          _
        %p929 = scmp.eq.s32.totalorder %s26, 1
        // Predicated region
        $region73: #{tpu_custom_call.1} parent=43 // pred_check
          %p930 = pneg %p929
        $region74: #{tpu_custom_call.1} parent=43 // pred_check_branch
          %932 = sbr.rel (%p930) target = $region76
        $region75: #{tpu_custom_call.1} parent=43 // pred_region
          %v933 = vld [vmem:[#allocation4] sm:$0xff]
          %v934 = vld [vmem:[#allocation4 + $0x8] sm:$0xff]
          %v935 = vld [vmem:[#allocation4 + $0x10] sm:$0xff]
          %v936 = vld [vmem:[#allocation4 + $0x18] sm:$0xff]
          %v937 = vld [vmem:[#allocation4 + $0x20] sm:$0xff]
          %v938 = vld [vmem:[#allocation4 + $0x28] sm:$0xff]
          %v939 = vld [vmem:[#allocation4 + $0x30] sm:$0xff]
          %v940 = vld [vmem:[#allocation4 + $0x38] sm:$0xff]
          %v941 = vld [vmem:[#allocation4 + $0x40] sm:$0xff]
          %v942 = vld [vmem:[#allocation4 + $0x48] sm:$0xff]
          %v943 = vld [vmem:[#allocation4 + $0x50] sm:$0xff]
          %v944 = vld [vmem:[#allocation4 + $0x58] sm:$0xff]
          %v945 = vld [vmem:[#allocation4 + $0x60] sm:$0xff]
          %v946 = vld [vmem:[#allocation4 + $0x68] sm:$0xff]
          %v947 = vld [vmem:[#allocation4 + $0x70] sm:$0xff]
          %v948 = vld [vmem:[#allocation4 + $0x78] sm:$0xff]
          %v949 = vld [vmem:[#allocation11] sm:$0xf]
          %v950 = vld [vmem:[#allocation11 + $0x4] sm:$0xf]
          %v951 = vld [vmem:[#allocation11 + $0x8] sm:$0xf]
          %v952 = vld [vmem:[#allocation11 + $0xc] sm:$0xf]
          %v953 = vld [vmem:[#allocation11 + $0x10] sm:$0xf]
          %v954 = vld [vmem:[#allocation11 + $0x14] sm:$0xf]
          %v955 = vld [vmem:[#allocation11 + $0x18] sm:$0xf]
          %v956 = vld [vmem:[#allocation11 + $0x1c] sm:$0xf]
          %v957 = vld [vmem:[#allocation11 + $0x20] sm:$0xf]
          %v958 = vld [vmem:[#allocation11 + $0x24] sm:$0xf]
          %v959 = vld [vmem:[#allocation11 + $0x28] sm:$0xf]
          %v960 = vld [vmem:[#allocation11 + $0x2c] sm:$0xf]
          %v961 = vld [vmem:[#allocation11 + $0x30] sm:$0xf]
          %v962 = vld [vmem:[#allocation11 + $0x34] sm:$0xf]
          %v963 = vld [vmem:[#allocation11 + $0x38] sm:$0xf]
          %v964 = vld [vmem:[#allocation11 + $0x3c] sm:$0xf]
          %s965 = sshra.s32 %s648, 3
          %s966 = sand.u32 %s648, 7
          %s967 = smul.addr %s965, 4
          %s968 = scalar_lea.vmem [#allocation3], %s967
          %v969 = vld [vmem:[%s968] sm:$0xf]
          %v970 = vld [vmem:[%s968 + $0x4] sm:$0xf]
          %v971 = vld [vmem:[%s968 + $0x8] sm:$0xf]
          %v972 = vld [vmem:[%s968 + $0xc] sm:$0xf]
          %v973 = vld [vmem:[%s968 + $0x10] sm:$0xf]
          %v974 = vld [vmem:[%s968 + $0x14] sm:$0xf]
          %v975 = vld [vmem:[%s968 + $0x18] sm:$0xf]
          %v976 = vld [vmem:[%s968 + $0x1c] sm:$0xf]
          %v977 = vld [vmem:[%s968 + $0x20] sm:$0xf]
          %v978 = vld [vmem:[%s968 + $0x24] sm:$0xf]
          %v979 = vld [vmem:[%s968 + $0x28] sm:$0xf]
          %v980 = vld [vmem:[%s968 + $0x2c] sm:$0xf]
          %v981 = vld [vmem:[%s968 + $0x30] sm:$0xf]
          %v982 = vld [vmem:[%s968 + $0x34] sm:$0xf]
          %v983 = vld [vmem:[%s968 + $0x38] sm:$0xf]
          %v984 = vld [vmem:[%s968 + $0x3c] sm:$0xf]
          %v1001 = vunpack.c.l.b16 %v949
          %v1002 = vunpack.c.l.b16 %v950
          %v1003 = vunpack.c.l.b16 %v951
          %v1004 = vunpack.c.l.b16 %v952
          %v1005 = vunpack.c.l.b16 %v953
          %v1006 = vunpack.c.l.b16 %v954
          %v1007 = vunpack.c.l.b16 %v955
          %v1008 = vunpack.c.l.b16 %v956
          %v1009 = vunpack.c.l.b16 %v957
          %v1010 = vunpack.c.l.b16 %v958
          %v1011 = vunpack.c.l.b16 %v959
          %v1012 = vunpack.c.l.b16 %v960
          %v1013 = vunpack.c.l.b16 %v961
          %v1014 = vunpack.c.l.b16 %v962
          %v1015 = vunpack.c.l.b16 %v963
          %v1016 = vunpack.c.l.b16 %v964
          %v1017 = vpack.c.b16 %v1002, %v1001
          %v1018 = vpack.c.b16 %v1004, %v1003
          %v1019 = vpack.c.b16 %v1006, %v1005
          %v1020 = vpack.c.b16 %v1008, %v1007
          %v1021 = vpack.c.b16 %v1010, %v1009
          %v1022 = vpack.c.b16 %v1012, %v1011
          %v1023 = vpack.c.b16 %v1014, %v1013
          %v1024 = vpack.c.b16 %v1016, %v1015
          %v1049 = vunpack.c.l.b16 %v969
          %v1050 = vunpack.c.l.b16 %v970
          %v1051 = vunpack.c.l.b16 %v971
          %v1052 = vunpack.c.l.b16 %v972
          %v1053 = vunpack.c.l.b16 %v973
          %v1054 = vunpack.c.l.b16 %v974
          %v1055 = vunpack.c.l.b16 %v975
          %v1056 = vunpack.c.l.b16 %v976
          %v1057 = vunpack.c.l.b16 %v977
          %v1058 = vunpack.c.l.b16 %v978
          %v1059 = vunpack.c.l.b16 %v979
          %v1060 = vunpack.c.l.b16 %v980
          %v1061 = vunpack.c.l.b16 %v981
          %v1062 = vunpack.c.l.b16 %v982
          %v1063 = vunpack.c.l.b16 %v983
          %v1064 = vunpack.c.l.b16 %v984
          %v1065 = vpack.c.b16 %v1050, %v1049
          %v1066 = vpack.c.b16 %v1052, %v1051
          %v1067 = vpack.c.b16 %v1054, %v1053
          %v1068 = vpack.c.b16 %v1056, %v1055
          %v1069 = vpack.c.b16 %v1058, %v1057
          %v1070 = vpack.c.b16 %v1060, %v1059
          %v1071 = vpack.c.b16 %v1062, %v1061
          %v1072 = vpack.c.b16 %v1064, %v1063
          %1081 = vmatprep.subr.bf16.mxu0 0
          %1082 = vmatpush1.bf16.msra.mxu0 %v1072
          %1083 = vmatprep.subr.bf16.mxu0 0
          %1084 = vmatpush1.bf16.msra.mxu0 %v1071
          %1085 = vmatprep.subr.bf16.mxu0 0
          %1086 = vmatpush1.bf16.msra.mxu0 %v1070
          %1087 = vmatprep.subr.bf16.mxu0 0
          %1088 = vmatpush1.bf16.msra.mxu0 %v1069
          %1089 = vmatprep.subr.bf16.mxu0 0
          %1090 = vmatpush1.bf16.msra.mxu0 %v1068
          %1091 = vmatprep.subr.bf16.mxu0 0
          %1092 = vmatpush1.bf16.msra.mxu0 %v1067
          %1093 = vmatprep.subr.bf16.mxu0 0
          %1094 = vmatpush1.bf16.msra.mxu0 %v1066
          %1095 = vmatprep.subr.bf16.mxu0 0
          %1096 = vmatpush1.bf16.msra.mxu0 %v1065
          %1097 = vmatprep.subr.bf16.mxu0 0
          %1098 = vmatpush2.bf16.msra.mxu0 0
          %1099 = vmatprep.subr.bf16.mxu0 0
          %1100 = vmatpush2.bf16.msra.mxu0 0
          %1101 = vmatprep.subr.bf16.mxu0 0
          %1102 = vmatpush2.bf16.msra.mxu0 0
          %1103 = vmatprep.subr.bf16.mxu0 0
          %1104 = vmatpush2.bf16.msra.mxu0 0
          %1105 = vmatprep.subr.bf16.mxu0 0
          %1106 = vmatpush2.bf16.msra.mxu0 0
          %1107 = vmatprep.subr.bf16.mxu0 0
          %1108 = vmatpush2.bf16.msra.mxu0 0
          %1109 = vmatprep.subr.bf16.mxu0 0
          %1110 = vmatpush2.bf16.msra.mxu0 0
          %1111 = vmatprep.subr.bf16.mxu0 0
          %1112 = vmatpush2.bf16.msra.mxu0 0
          %1113 = vmatprep.mubr.bf16.mxu0 0
          %1114 = vmatmul.mubr.bf16.gmra.mxu0 %v1017
          %v1115 = vpop.f32.mrf.mxu0
          %v1116 = vadd.f32 0.0, %v1115
          %v1117 = vpop.f32.mrf.mxu0
          %v1118 = vpop.f32.mrf.mxu0
          %v1119 = vadd.f32 0.0, %v1118
          %v1120 = vpop.f32.mrf.mxu0
          %1121 = vmatprep.mubr.bf16.mxu0 0
          %1122 = vmatmul.mubr.bf16.gmra.mxu0 %v1018
          %v1123 = vpop.f32.mrf.mxu0
          %v1124 = vadd.f32 0.0, %v1123
          %v1125 = vpop.f32.mrf.mxu0
          %v1126 = vpop.f32.mrf.mxu0
          %v1127 = vadd.f32 0.0, %v1126
          %v1128 = vpop.f32.mrf.mxu0
          %1129 = vmatprep.mubr.bf16.mxu0 0
          %1130 = vmatmul.mubr.bf16.gmra.mxu0 %v1019
          %v1131 = vpop.f32.mrf.mxu0
          %v1132 = vadd.f32 0.0, %v1131
          %v1133 = vpop.f32.mrf.mxu0
          %v1134 = vpop.f32.mrf.mxu0
          %v1135 = vadd.f32 0.0, %v1134
          %v1136 = vpop.f32.mrf.mxu0
          %1137 = vmatprep.mubr.bf16.mxu0 0
          %1138 = vmatmul.mubr.bf16.gmra.mxu0 %v1020
          %v1139 = vpop.f32.mrf.mxu0
          %v1140 = vadd.f32 0.0, %v1139
          %v1141 = vpop.f32.mrf.mxu0
          %v1142 = vpop.f32.mrf.mxu0
          %v1143 = vadd.f32 0.0, %v1142
          %v1144 = vpop.f32.mrf.mxu0
          %1145 = vmatprep.mubr.bf16.mxu0 0
          %1146 = vmatmul.mubr.bf16.gmra.mxu0 %v1021
          %v1147 = vpop.f32.mrf.mxu0
          %v1148 = vadd.f32 0.0, %v1147
          %v1149 = vpop.f32.mrf.mxu0
          %v1150 = vpop.f32.mrf.mxu0
          %v1151 = vadd.f32 0.0, %v1150
          %v1152 = vpop.f32.mrf.mxu0
          %1153 = vmatprep.mubr.bf16.mxu0 0
          %1154 = vmatmul.mubr.bf16.gmra.mxu0 %v1022
          %v1155 = vpop.f32.mrf.mxu0
          %v1156 = vadd.f32 0.0, %v1155
          %v1157 = vpop.f32.mrf.mxu0
          %v1158 = vpop.f32.mrf.mxu0
          %v1159 = vadd.f32 0.0, %v1158
          %v1160 = vpop.f32.mrf.mxu0
          %1161 = vmatprep.mubr.bf16.mxu0 0
          %1162 = vmatmul.mubr.bf16.gmra.mxu0 %v1023
          %v1163 = vpop.f32.mrf.mxu0
          %v1164 = vadd.f32 0.0, %v1163
          %v1165 = vpop.f32.mrf.mxu0
          %v1166 = vpop.f32.mrf.mxu0
          %v1167 = vadd.f32 0.0, %v1166
          %v1168 = vpop.f32.mrf.mxu0
          %1169 = vmatprep.mubr.bf16.mxu0 0
          %1170 = vmatmul.mubr.bf16.gmra.mxu0 %v1024
          %v1171 = vpop.f32.mrf.mxu0
          %v1172 = vadd.f32 0.0, %v1171
          %v1173 = vpop.f32.mrf.mxu0
          %v1174 = vpop.f32.mrf.mxu0
          %v1175 = vadd.f32 0.0, %v1174
          %v1176 = vpop.f32.mrf.mxu0
          %1177 = vdwg.mxu0
          %v1178 = vadd.f32 %v933, %v1116
          %v1179 = vadd.f32 %v934, %v1119
          %v1180 = vadd.f32 %v935, %v1124
          %v1181 = vadd.f32 %v936, %v1127
          %v1182 = vadd.f32 %v937, %v1132
          %v1183 = vadd.f32 %v938, %v1135
          %v1184 = vadd.f32 %v939, %v1140
          %v1185 = vadd.f32 %v940, %v1143
          %v1186 = vadd.f32 %v941, %v1148
          %v1187 = vadd.f32 %v942, %v1151
          %v1188 = vadd.f32 %v943, %v1156
          %v1189 = vadd.f32 %v944, %v1159
          %v1190 = vadd.f32 %v945, %v1164
          %v1191 = vadd.f32 %v946, %v1167
          %v1192 = vadd.f32 %v947, %v1172
          %v1193 = vadd.f32 %v948, %v1175
          %1194 = vst [vmem:[#allocation4] sm:$0xff] %v1178
          %1195 = vst [vmem:[#allocation4 + $0x8] sm:$0xff] %v1179
          %1196 = vst [vmem:[#allocation4 + $0x10] sm:$0xff] %v1180
          %1197 = vst [vmem:[#allocation4 + $0x18] sm:$0xff] %v1181
          %1198 = vst [vmem:[#allocation4 + $0x20] sm:$0xff] %v1182
          %1199 = vst [vmem:[#allocation4 + $0x28] sm:$0xff] %v1183
          %1200 = vst [vmem:[#allocation4 + $0x30] sm:$0xff] %v1184
          %1201 = vst [vmem:[#allocation4 + $0x38] sm:$0xff] %v1185
          %1202 = vst [vmem:[#allocation4 + $0x40] sm:$0xff] %v1186
          %1203 = vst [vmem:[#allocation4 + $0x48] sm:$0xff] %v1187
          %1204 = vst [vmem:[#allocation4 + $0x50] sm:$0xff] %v1188
          %1205 = vst [vmem:[#allocation4 + $0x58] sm:$0xff] %v1189
          %1206 = vst [vmem:[#allocation4 + $0x60] sm:$0xff] %v1190
          %1207 = vst [vmem:[#allocation4 + $0x68] sm:$0xff] %v1191
          %1208 = vst [vmem:[#allocation4 + $0x70] sm:$0xff] %v1192
          %1209 = vst [vmem:[#allocation4 + $0x78] sm:$0xff] %v1193
        $region76: #{tpu_custom_call.1} parent=43 // pred_fallthru
          _
        %p1210 = pnand %p315, %p319
        %p1211 = pneg %p1210
        // Predicated region
        $region77: #{tpu_custom_call.1} parent=43 // pred_check
          _
        $region78: #{tpu_custom_call.1} parent=43 // pred_check_branch
          %1213 = sbr.rel (%p1210) target = $region80
        $region79: #{tpu_custom_call.1} parent=43 // pred_region
          %v1214 = vld [vmem:[#allocation4] sm:$0xff]
          %v1215 = vld [vmem:[#allocation4 + $0x8] sm:$0xff]
          %v1216 = vld [vmem:[#allocation4 + $0x10] sm:$0xff]
          %v1217 = vld [vmem:[#allocation4 + $0x18] sm:$0xff]
          %v1218 = vld [vmem:[#allocation4 + $0x20] sm:$0xff]
          %v1219 = vld [vmem:[#allocation4 + $0x28] sm:$0xff]
          %v1220 = vld [vmem:[#allocation4 + $0x30] sm:$0xff]
          %v1221 = vld [vmem:[#allocation4 + $0x38] sm:$0xff]
          %v1222 = vld [vmem:[#allocation4 + $0x40] sm:$0xff]
          %v1223 = vld [vmem:[#allocation4 + $0x48] sm:$0xff]
          %v1224 = vld [vmem:[#allocation4 + $0x50] sm:$0xff]
          %v1225 = vld [vmem:[#allocation4 + $0x58] sm:$0xff]
          %v1226 = vld [vmem:[#allocation4 + $0x60] sm:$0xff]
          %v1227 = vld [vmem:[#allocation4 + $0x68] sm:$0xff]
          %v1228 = vld [vmem:[#allocation4 + $0x70] sm:$0xff]
          %v1229 = vld [vmem:[#allocation4 + $0x78] sm:$0xff]
          %v1230 = vld [vmem:[%s2] sm:$0x1]
          %v1232 = vlaneseq
          %v1233 = vshrl.u32 %v1232, 7
          %v1234 = vsub.s32 0, %v1233
          %v1235 = vrot.slane %v1230, %v1234
          %v1237 = vadd.f32 %v1214, %v1235
          %v1238 = vadd.f32 %v1215, %v1235
          %v1239 = vadd.f32 %v1216, %v1235
          %v1240 = vadd.f32 %v1217, %v1235
          %v1241 = vadd.f32 %v1218, %v1235
          %v1242 = vadd.f32 %v1219, %v1235
          %v1243 = vadd.f32 %v1220, %v1235
          %v1244 = vadd.f32 %v1221, %v1235
          %v1245 = vadd.f32 %v1222, %v1235
          %v1246 = vadd.f32 %v1223, %v1235
          %v1247 = vadd.f32 %v1224, %v1235
          %v1248 = vadd.f32 %v1225, %v1235
          %v1249 = vadd.f32 %v1226, %v1235
          %v1250 = vadd.f32 %v1227, %v1235
          %v1251 = vadd.f32 %v1228, %v1235
          %v1252 = vadd.f32 %v1229, %v1235
          %v1253 = vmax.f32 %v1237, 0.0
          %v1254 = vmax.f32 %v1238, 0.0
          %v1255 = vmax.f32 %v1239, 0.0
          %v1256 = vmax.f32 %v1240, 0.0
          %v1257 = vmax.f32 %v1241, 0.0
          %v1258 = vmax.f32 %v1242, 0.0
          %v1259 = vmax.f32 %v1243, 0.0
          %v1260 = vmax.f32 %v1244, 0.0
          %v1261 = vmax.f32 %v1245, 0.0
          %v1262 = vmax.f32 %v1246, 0.0
          %v1263 = vmax.f32 %v1247, 0.0
          %v1264 = vmax.f32 %v1248, 0.0
          %v1265 = vmax.f32 %v1249, 0.0
          %v1266 = vmax.f32 %v1250, 0.0
          %v1267 = vmax.f32 %v1251, 0.0
          %v1268 = vmax.f32 %v1252, 0.0
          %s1269 = smul.u32 %s27, 128
          %v1270 = vpack.c.bf16 %v1254, %v1253
          %v1271 = vpack.c.bf16 %v1256, %v1255
          %v1272 = vpack.c.bf16 %v1258, %v1257
          %v1273 = vpack.c.bf16 %v1260, %v1259
          %v1274 = vpack.c.bf16 %v1262, %v1261
          %v1275 = vpack.c.bf16 %v1264, %v1263
          %v1276 = vpack.c.bf16 %v1266, %v1265
          %v1277 = vpack.c.bf16 %v1268, %v1267
          %v1278 = vld [vmem:[#allocation10] sm:$0xf]
          %v1279 = vld [vmem:[#allocation10 + $0x4] sm:$0xf]
          %v1280 = vld [vmem:[#allocation10 + $0x8] sm:$0xf]
          %v1281 = vld [vmem:[#allocation10 + $0xc] sm:$0xf]
          %v1282 = vld [vmem:[#allocation10 + $0x10] sm:$0xf]
          %v1283 = vld [vmem:[#allocation10 + $0x14] sm:$0xf]
          %v1284 = vld [vmem:[#allocation10 + $0x18] sm:$0xf]
          %v1285 = vld [vmem:[#allocation10 + $0x1c] sm:$0xf]
          %v1286 = vld [vmem:[#allocation10 + $0x20] sm:$0xf]
          %v1287 = vld [vmem:[#allocation10 + $0x24] sm:$0xf]
          %v1288 = vld [vmem:[#allocation10 + $0x28] sm:$0xf]
          %v1289 = vld [vmem:[#allocation10 + $0x2c] sm:$0xf]
          %v1290 = vld [vmem:[#allocation10 + $0x30] sm:$0xf]
          %v1291 = vld [vmem:[#allocation10 + $0x34] sm:$0xf]
          %v1292 = vld [vmem:[#allocation10 + $0x38] sm:$0xf]
          %v1293 = vld [vmem:[#allocation10 + $0x3c] sm:$0xf]
          %v1310 = vunpack.c.l.b16 %v1278
          %v1311 = vunpack.c.l.b16 %v1279
          %v1312 = vunpack.c.l.b16 %v1280
          %v1313 = vunpack.c.l.b16 %v1281
          %v1314 = vunpack.c.l.b16 %v1282
          %v1315 = vunpack.c.l.b16 %v1283
          %v1316 = vunpack.c.l.b16 %v1284
          %v1317 = vunpack.c.l.b16 %v1285
          %v1318 = vunpack.c.l.b16 %v1286
          %v1319 = vunpack.c.l.b16 %v1287
          %v1320 = vunpack.c.l.b16 %v1288
          %v1321 = vunpack.c.l.b16 %v1289
          %v1322 = vunpack.c.l.b16 %v1290
          %v1323 = vunpack.c.l.b16 %v1291
          %v1324 = vunpack.c.l.b16 %v1292
          %v1325 = vunpack.c.l.b16 %v1293
          %v1326 = vpack.c.b16 %v1311, %v1310
          %v1327 = vpack.c.b16 %v1313, %v1312
          %v1328 = vpack.c.b16 %v1315, %v1314
          %v1329 = vpack.c.b16 %v1317, %v1316
          %v1330 = vpack.c.b16 %v1319, %v1318
          %v1331 = vpack.c.b16 %v1321, %v1320
          %v1332 = vpack.c.b16 %v1323, %v1322
          %v1333 = vpack.c.b16 %v1325, %v1324
          %1342 = vmatprep.subr.bf16.mxu0 0
          %1343 = vmatpush1.bf16.msra.mxu0 %v1333
          %1344 = vmatprep.subr.bf16.mxu0 0
          %1345 = vmatpush1.bf16.msra.mxu0 %v1332
          %1346 = vmatprep.subr.bf16.mxu0 0
          %1347 = vmatpush1.bf16.msra.mxu0 %v1331
          %1348 = vmatprep.subr.bf16.mxu0 0
          %1349 = vmatpush1.bf16.msra.mxu0 %v1330
          %1350 = vmatprep.subr.bf16.mxu0 0
          %1351 = vmatpush1.bf16.msra.mxu0 %v1329
          %1352 = vmatprep.subr.bf16.mxu0 0
          %1353 = vmatpush1.bf16.msra.mxu0 %v1328
          %1354 = vmatprep.subr.bf16.mxu0 0
          %1355 = vmatpush1.bf16.msra.mxu0 %v1327
          %1356 = vmatprep.subr.bf16.mxu0 0
          %1357 = vmatpush1.bf16.msra.mxu0 %v1326
          %1358 = vmatprep.subr.bf16.mxu0 0
          %1359 = vmatpush2.bf16.msra.mxu0 0
          %1360 = vmatprep.subr.bf16.mxu0 0
          %1361 = vmatpush2.bf16.msra.mxu0 0
          %1362 = vmatprep.subr.bf16.mxu0 0
          %1363 = vmatpush2.bf16.msra.mxu0 0
          %1364 = vmatprep.subr.bf16.mxu0 0
          %1365 = vmatpush2.bf16.msra.mxu0 0
          %1366 = vmatprep.subr.bf16.mxu0 0
          %1367 = vmatpush2.bf16.msra.mxu0 0
          %1368 = vmatprep.subr.bf16.mxu0 0
          %1369 = vmatpush2.bf16.msra.mxu0 0
          %1370 = vmatprep.subr.bf16.mxu0 0
          %1371 = vmatpush2.bf16.msra.mxu0 0
          %1372 = vmatprep.subr.bf16.mxu0 0
          %1373 = vmatpush2.bf16.msra.mxu0 0
          %1374 = vmatprep.mubr.bf16.mxu0 0
          %1375 = vmatmul.mubr.bf16.gmra.mxu0 %v1270
          %v1376 = vpop.f32.mrf.mxu0
          %v1377 = vadd.f32 0.0, %v1376
          %v1378 = vpop.f32.mrf.mxu0
          %v1379 = vpop.f32.mrf.mxu0
          %v1380 = vadd.f32 0.0, %v1379
          %v1381 = vpop.f32.mrf.mxu0
          %1382 = vmatprep.mubr.bf16.mxu0 0
          %1383 = vmatmul.mubr.bf16.gmra.mxu0 %v1271
          %v1384 = vpop.f32.mrf.mxu0
          %v1385 = vadd.f32 0.0, %v1384
          %v1386 = vpop.f32.mrf.mxu0
          %v1387 = vpop.f32.mrf.mxu0
          %v1388 = vadd.f32 0.0, %v1387
          %v1389 = vpop.f32.mrf.mxu0
          %1390 = vmatprep.mubr.bf16.mxu0 0
          %1391 = vmatmul.mubr.bf16.gmra.mxu0 %v1272
          %v1392 = vpop.f32.mrf.mxu0
          %v1393 = vadd.f32 0.0, %v1392
          %v1394 = vpop.f32.mrf.mxu0
          %v1395 = vpop.f32.mrf.mxu0
          %v1396 = vadd.f32 0.0, %v1395
          %v1397 = vpop.f32.mrf.mxu0
          %1398 = vmatprep.mubr.bf16.mxu0 0
          %1399 = vmatmul.mubr.bf16.gmra.mxu0 %v1273
          %v1400 = vpop.f32.mrf.mxu0
          %v1401 = vadd.f32 0.0, %v1400
          %v1402 = vpop.f32.mrf.mxu0
          %v1403 = vpop.f32.mrf.mxu0
          %v1404 = vadd.f32 0.0, %v1403
          %v1405 = vpop.f32.mrf.mxu0
          %1406 = vmatprep.mubr.bf16.mxu0 0
          %1407 = vmatmul.mubr.bf16.gmra.mxu0 %v1274
          %v1408 = vpop.f32.mrf.mxu0
          %v1409 = vadd.f32 0.0, %v1408
          %v1410 = vpop.f32.mrf.mxu0
          %v1411 = vpop.f32.mrf.mxu0
          %v1412 = vadd.f32 0.0, %v1411
          %v1413 = vpop.f32.mrf.mxu0
          %1414 = vmatprep.mubr.bf16.mxu0 0
          %1415 = vmatmul.mubr.bf16.gmra.mxu0 %v1275
          %v1416 = vpop.f32.mrf.mxu0
          %v1417 = vadd.f32 0.0, %v1416
          %v1418 = vpop.f32.mrf.mxu0
          %v1419 = vpop.f32.mrf.mxu0
          %v1420 = vadd.f32 0.0, %v1419
          %v1421 = vpop.f32.mrf.mxu0
          %1422 = vmatprep.mubr.bf16.mxu0 0
          %1423 = vmatmul.mubr.bf16.gmra.mxu0 %v1276
          %v1424 = vpop.f32.mrf.mxu0
          %v1425 = vadd.f32 0.0, %v1424
          %v1426 = vpop.f32.mrf.mxu0
          %v1427 = vpop.f32.mrf.mxu0
          %v1428 = vadd.f32 0.0, %v1427
          %v1429 = vpop.f32.mrf.mxu0
          %1430 = vmatprep.mubr.bf16.mxu0 0
          %1431 = vmatmul.mubr.bf16.gmra.mxu0 %v1277
          %v1432 = vpop.f32.mrf.mxu0
          %v1433 = vadd.f32 0.0, %v1432
          %v1434 = vpop.f32.mrf.mxu0
          %v1435 = vpop.f32.mrf.mxu0
          %v1436 = vadd.f32 0.0, %v1435
          %v1437 = vpop.f32.mrf.mxu0
          %1438 = vdwg.mxu0
          %v1439 = vpack.c.bf16 %v1380, %v1377
          %v1440 = vpack.c.bf16 %v1388, %v1385
          %v1441 = vpack.c.bf16 %v1396, %v1393
          %v1442 = vpack.c.bf16 %v1404, %v1401
          %v1443 = vpack.c.bf16 %v1412, %v1409
          %v1444 = vpack.c.bf16 %v1420, %v1417
          %v1445 = vpack.c.bf16 %v1428, %v1425
          %v1446 = vpack.c.bf16 %v1436, %v1433
          %v1455 = vunpack.c.l.b16 %v1439
          %v1456 = vunpack.c.h.b16 %v1439
          %v1457 = vunpack.c.l.b16 %v1440
          %v1458 = vunpack.c.h.b16 %v1440
          %v1459 = vunpack.c.l.b16 %v1441
          %v1460 = vunpack.c.h.b16 %v1441
          %v1461 = vunpack.c.l.b16 %v1442
          %v1462 = vunpack.c.h.b16 %v1442
          %v1463 = vunpack.c.l.b16 %v1443
          %v1464 = vunpack.c.h.b16 %v1443
          %v1465 = vunpack.c.l.b16 %v1444
          %v1466 = vunpack.c.h.b16 %v1444
          %v1467 = vunpack.c.l.b16 %v1445
          %v1468 = vunpack.c.h.b16 %v1445
          %v1469 = vunpack.c.l.b16 %v1446
          %v1470 = vunpack.c.h.b16 %v1446
          %v1471 = vpack.c.b16 %v1455, %v1455
          %v1472 = vpack.c.b16 %v1456, %v1456
          %v1473 = vpack.c.b16 %v1457, %v1457
          %v1474 = vpack.c.b16 %v1458, %v1458
          %v1475 = vpack.c.b16 %v1459, %v1459
          %v1476 = vpack.c.b16 %v1460, %v1460
          %v1477 = vpack.c.b16 %v1461, %v1461
          %v1478 = vpack.c.b16 %v1462, %v1462
          %v1479 = vpack.c.b16 %v1463, %v1463
          %v1480 = vpack.c.b16 %v1464, %v1464
          %v1481 = vpack.c.b16 %v1465, %v1465
          %v1482 = vpack.c.b16 %v1466, %v1466
          %v1483 = vpack.c.b16 %v1467, %v1467
          %v1484 = vpack.c.b16 %v1468, %v1468
          %v1485 = vpack.c.b16 %v1469, %v1469
          %v1486 = vpack.c.b16 %v1470, %v1470
          %s1503 = sshra.s32 %s1269, 3
          %s1504 = sand.u32 %s1269, 7
          %s1505 = smul.addr %s1503, 4
          %s1506 = scalar_lea.vmem [#allocation3], %s1505
          %1507 = vst [vmem:[%s1506] sm:$0xf] %v1471
          %1508 = vst [vmem:[%s1506 + $0x4] sm:$0xf] %v1472
          %1509 = vst [vmem:[%s1506 + $0x8] sm:$0xf] %v1473
          %1510 = vst [vmem:[%s1506 + $0xc] sm:$0xf] %v1474
          %1511 = vst [vmem:[%s1506 + $0x10] sm:$0xf] %v1475
          %1512 = vst [vmem:[%s1506 + $0x14] sm:$0xf] %v1476
          %1513 = vst [vmem:[%s1506 + $0x18] sm:$0xf] %v1477
          %1514 = vst [vmem:[%s1506 + $0x1c] sm:$0xf] %v1478
          %1515 = vst [vmem:[%s1506 + $0x20] sm:$0xf] %v1479
          %1516 = vst [vmem:[%s1506 + $0x24] sm:$0xf] %v1480
          %1517 = vst [vmem:[%s1506 + $0x28] sm:$0xf] %v1481
          %1518 = vst [vmem:[%s1506 + $0x2c] sm:$0xf] %v1482
          %1519 = vst [vmem:[%s1506 + $0x30] sm:$0xf] %v1483
          %1520 = vst [vmem:[%s1506 + $0x34] sm:$0xf] %v1484
          %1521 = vst [vmem:[%s1506 + $0x38] sm:$0xf] %v1485
          %1522 = vst [vmem:[%s1506 + $0x3c] sm:$0xf] %v1486
          %1523 = vst [vmem:[#allocation13] sm:$0xff] 0.0
          %1524 = vst [vmem:[#allocation13 + $0x8] sm:$0xff] 0.0
          %1525 = vst [vmem:[#allocation13 + $0x10] sm:$0xff] 0.0
          %1526 = vst [vmem:[#allocation13 + $0x18] sm:$0xff] 0.0
          %1527 = vst [vmem:[#allocation13 + $0x20] sm:$0xff] 0.0
          %1528 = vst [vmem:[#allocation13 + $0x28] sm:$0xff] 0.0
          %1529 = vst [vmem:[#allocation13 + $0x30] sm:$0xff] 0.0
          %1530 = vst [vmem:[#allocation13 + $0x38] sm:$0xff] 0.0
          %1531 = vst [vmem:[#allocation13 + $0x40] sm:$0xff] 0.0
          %1532 = vst [vmem:[#allocation13 + $0x48] sm:$0xff] 0.0
          %1533 = vst [vmem:[#allocation13 + $0x50] sm:$0xff] 0.0
          %1534 = vst [vmem:[#allocation13 + $0x58] sm:$0xff] 0.0
          %1535 = vst [vmem:[#allocation13 + $0x60] sm:$0xff] 0.0
          %1536 = vst [vmem:[#allocation13 + $0x68] sm:$0xff] 0.0
          %1537 = vst [vmem:[#allocation13 + $0x70] sm:$0xff] 0.0
          %1538 = vst [vmem:[#allocation13 + $0x78] sm:$0xff] 0.0
        $region80: #{tpu_custom_call.1} parent=43 // pred_fallthru
          _
        %p1539 = pnand %p929, %p319
        %p1540 = pneg %p1539
        // Predicated region
        $region81: #{tpu_custom_call.1} parent=43 // pred_check
          _
        $region82: #{tpu_custom_call.1} parent=43 // pred_check_branch
          %1542 = sbr.rel (%p1539) target = $region84
        $region83: #{tpu_custom_call.1} parent=43 // pred_region
          %v1543 = vld [vmem:[#allocation4] sm:$0xff]
          %v1544 = vld [vmem:[#allocation4 + $0x8] sm:$0xff]
          %v1545 = vld [vmem:[#allocation4 + $0x10] sm:$0xff]
          %v1546 = vld [vmem:[#allocation4 + $0x18] sm:$0xff]
          %v1547 = vld [vmem:[#allocation4 + $0x20] sm:$0xff]
          %v1548 = vld [vmem:[#allocation4 + $0x28] sm:$0xff]
          %v1549 = vld [vmem:[#allocation4 + $0x30] sm:$0xff]
          %v1550 = vld [vmem:[#allocation4 + $0x38] sm:$0xff]
          %v1551 = vld [vmem:[#allocation4 + $0x40] sm:$0xff]
          %v1552 = vld [vmem:[#allocation4 + $0x48] sm:$0xff]
          %v1553 = vld [vmem:[#allocation4 + $0x50] sm:$0xff]
          %v1554 = vld [vmem:[#allocation4 + $0x58] sm:$0xff]
          %v1555 = vld [vmem:[#allocation4 + $0x60] sm:$0xff]
          %v1556 = vld [vmem:[#allocation4 + $0x68] sm:$0xff]
          %v1557 = vld [vmem:[#allocation4 + $0x70] sm:$0xff]
          %v1558 = vld [vmem:[#allocation4 + $0x78] sm:$0xff]
          %v1559 = vld [vmem:[%s4] sm:$0x1]
          %v1561 = vlaneseq
          %v1562 = vshrl.u32 %v1561, 7
          %v1563 = vsub.s32 0, %v1562
          %v1564 = vrot.slane %v1559, %v1563
          %v1566 = vadd.f32 %v1543, %v1564
          %v1567 = vadd.f32 %v1544, %v1564
          %v1568 = vadd.f32 %v1545, %v1564
          %v1569 = vadd.f32 %v1546, %v1564
          %v1570 = vadd.f32 %v1547, %v1564
          %v1571 = vadd.f32 %v1548, %v1564
          %v1572 = vadd.f32 %v1549, %v1564
          %v1573 = vadd.f32 %v1550, %v1564
          %v1574 = vadd.f32 %v1551, %v1564
          %v1575 = vadd.f32 %v1552, %v1564
          %v1576 = vadd.f32 %v1553, %v1564
          %v1577 = vadd.f32 %v1554, %v1564
          %v1578 = vadd.f32 %v1555, %v1564
          %v1579 = vadd.f32 %v1556, %v1564
          %v1580 = vadd.f32 %v1557, %v1564
          %v1581 = vadd.f32 %v1558, %v1564
          %1582 = vst [vmem:[#allocation13] sm:$0xff] %v1566
          %1583 = vst [vmem:[#allocation13 + $0x8] sm:$0xff] %v1567
          %1584 = vst [vmem:[#allocation13 + $0x10] sm:$0xff] %v1568
          %1585 = vst [vmem:[#allocation13 + $0x18] sm:$0xff] %v1569
          %1586 = vst [vmem:[#allocation13 + $0x20] sm:$0xff] %v1570
          %1587 = vst [vmem:[#allocation13 + $0x28] sm:$0xff] %v1571
          %1588 = vst [vmem:[#allocation13 + $0x30] sm:$0xff] %v1572
          %1589 = vst [vmem:[#allocation13 + $0x38] sm:$0xff] %v1573
          %1590 = vst [vmem:[#allocation13 + $0x40] sm:$0xff] %v1574
          %1591 = vst [vmem:[#allocation13 + $0x48] sm:$0xff] %v1575
          %1592 = vst [vmem:[#allocation13 + $0x50] sm:$0xff] %v1576
          %1593 = vst [vmem:[#allocation13 + $0x58] sm:$0xff] %v1577
          %1594 = vst [vmem:[#allocation13 + $0x60] sm:$0xff] %v1578
          %1595 = vst [vmem:[#allocation13 + $0x68] sm:$0xff] %v1579
          %1596 = vst [vmem:[#allocation13 + $0x70] sm:$0xff] %v1580
          %1597 = vst [vmem:[#allocation13 + $0x78] sm:$0xff] %v1581
        $region84: #{tpu_custom_call.1} parent=43 // pred_fallthru
          _
        // Predicated region
        $region85: #{tpu_custom_call.1} parent=43 // pred_check
          %p1598 = pneg %p191
        $region86: #{tpu_custom_call.1} parent=43 // pred_check_branch
          %1600 = sbr.rel (%p1598) target = $region88
        $region87: #{tpu_custom_call.1} parent=43 // pred_region
          %s1601 = smul.u32 16, %s27
          %s1603 = ssub.s32 2048, 2048
          %1604 = vsyncadd [#allocation7], %s1603
          %s1605 = smul.addr %s1601, 128
          %s1606 = scalar_lea.hbm %s6, %s1605
          %s1607 = sshll.u32 [#allocation13], 4
          %s1608 = int_to_ptr.vmem [resolvable:$true] %s1607
          %1613 = dma.vmem_to_hbm [thread:$0]  %s1608, 2048, %s1606, [#allocation7], 128, 128, 8
        $region88: #{tpu_custom_call.1} parent=43 // pred_fallthru
          _
        // Predicated region
        $region89: #{tpu_custom_call.1} parent=43 // pred_check
          %p1614 = pneg %p191
        $region90: #{tpu_custom_call.1} parent=43 // pred_check_branch
          %1616 = sbr.rel (%p1614) target = $region92
        $region91: #{tpu_custom_call.1} parent=43 // pred_region
          %1617 = dma.done [#allocation7], 2048
        $region92: #{tpu_custom_call.1} parent=43 // pred_fallthru
          _
      $region44: #{tpu_custom_call.1} parent=5 // pred_fallthru
        _
      %p1618 = scmp.le.s32.totalorder 2, %s16
      // Predicated region
      $region93: #{tpu_custom_call.1} parent=5 // pred_check
        %p1619 = pneg %p1618
      $region94: #{tpu_custom_call.1} parent=5 // pred_check_branch
        %1621 = sbr.rel (%p1619) target = $region96
      $region95: #{tpu_custom_call.1} parent=5 // pred_region
        %s1622 = ssub.s32 %s16, 2
      $region96: #{tpu_custom_call.1} parent=5 // pred_fallthru
        _
    $region6: #{tpu_custom_call.1} parent=1 // loop_footer
      %s20 = sadd.s32 1, %s16
    $region7: #{tpu_custom_call.1} parent=1 // loop_footer_branch
      %15 = sbr.rel target = $region3
    $region8: #{tpu_custom_call.1} parent=1 // loop_exit
      _
    %1623 = vsyncpa [#allocation6], 1
    %s1624 = scalar_lea.sflag [#allocation6], 1
    %1625 = vsyncpa %s1624, 1
    %1626 = vsyncpa [#allocation9], 1
    %1627 = vsyncpa [#allocation12], 1
    %1628 = vsyncpa [#allocation7], 1
    %s1629 = scalar_lea.sflag [#allocation7], 1
    %1630 = vsyncpa %s1629, 1

</llo_original>
